<compile_context>
chip_gen: v7x
topology: tpu7x:2x2x1
jax: 0.10.0
libtpu: 0.0.40
codegen_flags: <defaults>
</compile_context>

<pallas_src>
import functools
import math

import jax
import jax.numpy as jnp
from jax.experimental import pallas as pl
from jax.experimental.pallas import tpu as pltpu

_SQRT2_INV = 0.7071067811865476
_TAPS3 = tuple((ky, kx) for ky in range(3) for kx in range(3))
# ConvTranspose2d(k=5, s=2, p=2, output_padding=1) phase decomposition.
# For output row 2m+ry, only these kernel rows contribute; dy is the offset into
# the 1-pixel zero-padded window (input row m + dy - 1).
_DECONV_ROW_TAPS = {0: ((0, 4), (1, 2), (2, 0)), 1: ((1, 3), (2, 1))}


# ----------------------------- in-kernel math ------------------------------

def _erf_approx(x):
    # Abramowitz & Stegun 7.1.26, max abs err ~1.5e-7 (VPU/EUP ops only).
    a1, a2, a3, a4, a5 = (0.254829592, -0.284496736, 1.421413741,
                          -1.453152027, 1.061405429)
    p = 0.3275911
    s = jnp.where(x >= 0.0, 1.0, -1.0)
    z = jnp.abs(x)
    t = 1.0 / (1.0 + p * z)
    poly = ((((a5 * t + a4) * t + a3) * t + a2) * t + a1) * t
    return s * (1.0 - poly * jnp.exp(-z * z))


def _apply_act(y, act):
    if act == 'none':
        return y
    if act == 'relu':
        return jnp.maximum(y, 0.0)
    if act == 'gelu':
        # TODO(synk): PyTorch nn.GELU() default is exact-erf GELU; in-kernel we use a
        # high-accuracy erf approximation (lax.erf may not lower in Mosaic).
        return 0.5 * y * (1.0 + _erf_approx(y * _SQRT2_INV))
    if act == 'sigmoid':
        return 1.0 / (1.0 + jnp.exp(-y))
    raise ValueError(act)


# ------------------------------- small utils -------------------------------

def _round_up(x, m):
    return (x + m - 1) // m * m


def _pick_row_tile(Hp, Wp, cmax):
    """Largest divisor of Hp with a ~<=2MB f32 halo window (and <=32 rows)."""
    budget = max(1, (2 * 1024 * 1024) // max(1, Wp * cmax * 4))
    target = min(32, budget)
    best = 1
    for d in range(1, Hp + 1):
        if Hp % d == 0 and d <= target:
            best = d
    return best


def _to_flat_padded(x_nhwc):
    """NHWC -> flat zero-padded layout (B, (H+2)*(W+2), C)."""
    B, H, W, C = x_nhwc.shape
    xp = jnp.pad(x_nhwc, ((0, 0), (1, 1), (1, 1), (0, 0)))
    return xp.reshape(B, (H + 2) * (W + 2), C)


def _interior_mask(H, W):
    m = jnp.zeros((H + 2, W + 2), jnp.float32).at[1:H + 1, 1:W + 1].set(1.0)
    return m.reshape((H + 2) * (W + 2), 1)


def _flat_window_tiles(xflat, Hp, Wp, tr):
    """(B, Hp*Wp, C) -> (B, nt, (tr+2)*Wp+2, C) overlapping row windows (1-row halo
    plus one extra element each side so all 3x3 flat tap offsets stay in bounds)."""
    B, S, C = xflat.shape
    nt = Hp // tr
    sw = (tr + 2) * Wp + 2
    ext = jnp.pad(xflat, ((0, 0), (Wp + 1, Wp + 1), (0, 0)))
    if nt == 1:
        return ext[:, None], nt
    tiles = [ext[:, t * tr * Wp: t * tr * Wp + sw] for t in range(nt)]
    return jnp.stack(tiles, axis=1), nt


# ----------------------------- Pallas kernels ------------------------------

def _resblock_kernel(x_ref, m_ref, w1_ref, b1_ref, wm_ref, bm_ref, w3_ref, b3_ref,
                     o_ref, h_scr, *, s_out, wp, act_mid, act_out, depthwise):
    """Fused conv1x1 -> act -> 3x3(dense|depthwise) -> act -> conv1x1 -> +x -> act.

    x_ref : (Sw, Cin) f32 row window with halo   m_ref : (Sw, 1) interior mask
    h_scr : (Sw, Cmid) f32 VMEM scratch (the wide intermediate never hits HBM)
    o_ref : (s_out, Cout) f32
    """
    cmid = w1_ref.shape[-1]

    # stage 1: pointwise conv + act on the whole window (bf16 MXU, f32 accumulate)
    h = jnp.dot(x_ref[...].astype(jnp.bfloat16), w1_ref[...],
                preferred_element_type=jnp.float32) + b1_ref[...]
    h = _apply_act(h, act_mid)
    # zero the padding ring so the 3x3 stage sees true zero padding
    h_scr[...] = jnp.where(m_ref[...] > 0.5, h, 0.0)

    # stage 2: 3x3 as 9 accumulated taps (flat offset ky*Wp + kx into the window)
    acc = jnp.zeros((s_out, cmid), jnp.float32)
    for t, (ky, kx) in enumerate(_TAPS3):
        off = ky * wp + kx
        sl = h_scr[pl.ds(off, s_out), :]
        if depthwise:
            acc = acc + sl * wm_ref[t]                         # (1, Cmid) broadcast
        else:
            acc = acc + jnp.dot(sl.astype(jnp.bfloat16), wm_ref[t],
                                preferred_element_type=jnp.float32)
    mid = _apply_act(acc + bm_ref[...], act_mid)

    # stage 3: pointwise conv back + residual + output act, re-mask the ring
    y = jnp.dot(mid.astype(jnp.bfloat16), w3_ref[...],
                preferred_element_type=jnp.float32) + b3_ref[...]
    y = y + x_ref[pl.ds(wp + 1, s_out), :]
    y = _apply_act(y, act_out)
    o_ref[...] = jnp.where(m_ref[pl.ds(wp + 1, s_out), :] > 0.5, y, 0.0)


def _deconv_kernel(x_ref, w_ref, b_ref, o_ref, xb_scr, *, phase_taps, s_out, cout):
    """Phase-decomposed ConvTranspose2d(5, s=2): 4 output phases, 25 tap matmuls.

    x_ref : (Sw, Cin) f32 window   w_ref : (25, Cin, cout) bf16   b_ref : (1, 4*cout)
    o_ref : (s_out, 4*cout) -- phase p=(ry,rx) in channel block p.
    """
    xb_scr[...] = x_ref[...].astype(jnp.bfloat16)
    for p, taps in enumerate(phase_taps):
        acc = jnp.zeros((s_out, cout), jnp.float32)
        for (ti, off) in taps:
            acc = acc + jnp.dot(xb_scr[pl.ds(off, s_out), :], w_ref[ti],
                                preferred_element_type=jnp.float32)
        o_ref[:, p * cout:(p + 1) * cout] = acc + b_ref[:, p * cout:(p + 1) * cout]


def _gate_kernel(x_ref, a_ref, id_ref, w_ref, b_ref, o_ref):
    """Fused AttentionBlock tail: conv1x1 projection + a*sigmoid(.)+identity."""
    y = jnp.dot(x_ref[...].astype(jnp.bfloat16), w_ref[...],
                preferred_element_type=jnp.float32) + b_ref[...]
    o_ref[...] = a_ref[...] * _apply_act(y, 'sigmoid') + id_ref[...]


_PAR2 = pltpu.CompilerParams(dimension_semantics=("parallel", "parallel"))


# ------------------------------ layer wrappers ------------------------------

def fused_residual_block(xflat, p, H, W, act_mid, act_out):
    B, S, cin = xflat.shape
    Hp, Wp = H + 2, W + 2
    assert S == Hp * Wp
    cmid = p['w1'].shape[1]
    cout = p['w3'].shape[1]
    tr = _pick_row_tile(Hp, Wp, max(cin, cmid, cout))
    nt = Hp // tr
    sw = (tr + 2) * Wp + 2
    s_out = tr * Wp
    xt, _ = _flat_window_tiles(xflat, Hp, Wp, tr)
    mt, _ = _flat_window_tiles(_interior_mask(H, W)[None], Hp, Wp, tr)
    mt = mt[0]
    kern = functools.partial(_resblock_kernel, s_out=s_out, wp=Wp,
                             act_mid=act_mid, act_out=act_out,
                             depthwise=p['depthwise'])
    y = pl.pallas_call(
        kern,
        grid=(B, nt),
        in_specs=[
            pl.BlockSpec((None, None, sw, cin), lambda b, t: (b, t, 0, 0)),
            pl.BlockSpec((None, sw, 1), lambda b, t: (t, 0, 0)),
            pl.BlockSpec(p['w1'].shape, lambda b, t: (0, 0)),
            pl.BlockSpec(p['b1'].shape, lambda b, t: (0, 0)),
            pl.BlockSpec(p['wm'].shape, lambda b, t: (0, 0, 0)),
            pl.BlockSpec(p['bm'].shape, lambda b, t: (0, 0)),
            pl.BlockSpec(p['w3'].shape, lambda b, t: (0, 0)),
            pl.BlockSpec(p['b3'].shape, lambda b, t: (0, 0)),
        ],
        out_specs=pl.BlockSpec((None, None, s_out, cout), lambda b, t: (b, t, 0, 0)),
        out_shape=jax.ShapeDtypeStruct((B, nt, s_out, cout), jnp.float32),
        scratch_shapes=[pltpu.VMEM((sw, cmid), jnp.float32)],
        compiler_params=_PAR2,
    )(xt, mt, p['w1'], p['b1'], p['wm'], p['bm'], p['w3'], p['b3'])
    return y.reshape(B, Hp * Wp, cout)


def deconv_block(xflat, p, H, W, final=False):
    B, S, cin = xflat.shape
    Hp, Wp = H + 2, W + 2
    cpad, cout = p['cpad'], p['cout']
    tr = _pick_row_tile(Hp, Wp, max(cin, 4 * cpad))
    nt = Hp // tr
    sw = (tr + 2) * Wp + 2
    s_out = tr * Wp
    xt, _ = _flat_window_tiles(xflat, Hp, Wp, tr)
    phase_taps = tuple(tuple((ti, dy * Wp + dx) for (ti, dy, dx) in taps)
                       for taps in p['phase_taps'])
    kern = functools.partial(_deconv_kernel, phase_taps=phase_taps,
                             s_out=s_out, cout=cpad)
    y = pl.pallas_call(
        kern,
        grid=(B, nt),
        in_specs=[
            pl.BlockSpec((None, None, sw, cin), lambda b, t: (b, t, 0, 0)),
            pl.BlockSpec(p['w'].shape, lambda b, t: (0, 0, 0)),
            pl.BlockSpec(p['b'].shape, lambda b, t: (0, 0)),
        ],
        out_specs=pl.BlockSpec((None, None, s_out, 4 * cpad), lambda b, t: (b, t, 0, 0)),
        out_shape=jax.ShapeDtypeStruct((B, nt, s_out, 4 * cpad), jnp.float32),
        scratch_shapes=[pltpu.VMEM((sw, cin), jnp.bfloat16)],
        compiler_params=_PAR2,
    )(xt, p['w'], p['b'])
    # Un-interleave phases: phase (ry, rx) value at (m, n) -> output (2m+ry, 2n+rx).
    y = y.reshape(B, Hp, Wp, 2, 2, cpad)[:, 1:H + 1, 1:W + 1, :, :, :cout]
    y = jnp.transpose(y, (0, 1, 3, 2, 4, 5)).reshape(B, 2 * H, 2 * W, cout)
    if final:
        return y
    return _to_flat_padded(y)


def attention_proj_gate(bflat, aflat, idflat, w, bias, H, W):
    B, S, C = bflat.shape
    Hp, Wp = H + 2, W + 2
    tr = _pick_row_tile(Hp, Wp, C)
    nt = Hp // tr
    ts = tr * Wp
    b4 = bflat.reshape(B, nt, ts, C)
    a4 = aflat.reshape(B, nt, ts, C)
    i4 = idflat.reshape(B, nt, ts, C)
    y = pl.pallas_call(
        _gate_kernel,
        grid=(B, nt),
        in_specs=[
            pl.BlockSpec((None, None, ts, C), lambda b, t: (b, t, 0, 0)),
            pl.BlockSpec((None, None, ts, C), lambda b, t: (b, t, 0, 0)),
            pl.BlockSpec((None, None, ts, C), lambda b, t: (b, t, 0, 0)),
            pl.BlockSpec(w.shape, lambda b, t: (0, 0)),
            pl.BlockSpec(bias.shape, lambda b, t: (0, 0)),
        ],
        out_specs=pl.BlockSpec((None, None, ts, C), lambda b, t: (b, t, 0, 0)),
        out_shape=jax.ShapeDtypeStruct((B, nt, ts, C), jnp.float32),
        compiler_params=_PAR2,
    )(b4, a4, i4, w, bias)
    return y.reshape(B, S, C)


def attention_block(xf, p, H, W):
    a = xf
    for rp in p['conv_a']:
        a = fused_residual_block(a, rp, H, W, act_mid='relu', act_out='relu')
    bpre = xf
    for rp in p['conv_b_units']:
        bpre = fused_residual_block(bpre, rp, H, W, act_mid='relu', act_out='relu')
    return attention_proj_gate(bpre, a, xf, p['proj_w'], p['proj_b'], H, W)


# ------------------------ parameters: torch-layout init ---------------------

class _KeyGen:
    def __init__(self, key):
        self._key = key

    def __call__(self):
        self._key, sub = jax.random.split(self._key)
        return sub


def _conv_p(kg, cin, cout, k):
    fan_in = cin * k * k
    return {'w': jax.random.normal(kg(), (cout, cin, k, k), jnp.float32) / math.sqrt(fan_in),
            'b': 0.01 * jax.random.normal(kg(), (cout,), jnp.float32)}


def _deconv_p(kg, cin, cout, k=5):
    return {'w': jax.random.normal(kg(), (cin, cout, k, k), jnp.float32) / math.sqrt(cin * k * k),
            'b': 0.01 * jax.random.normal(kg(), (cout,), jnp.float32)}


def _resunit_p(kg, n):
    return {'depthwise': False,
            'c1': _conv_p(kg, n, n // 2, 1),
            'c2': _conv_p(kg, n // 2, n // 2, 3),
            'c3': _conv_p(kg, n // 2, n, 1)}


def _attention_p(kg, n):
    return {'conv_a': [_resunit_p(kg, n) for _ in range(3)],
            'conv_b_units': [_resunit_p(kg, n) for _ in range(3)],
            'conv_b_proj': _conv_p(kg, n, n, 1)}


def _bottleneck_p(kg, n, groups=1):
    mid = n * 2
    depthwise = (groups == mid)
    p = {'depthwise': depthwise,
         'c1': _conv_p(kg, n, mid, 1),
         'c3': _conv_p(kg, mid, n, 1)}
    if depthwise:
        p['dw'] = {'w': jax.random.normal(kg(), (mid, 1, 3, 3), jnp.float32) / 3.0,
                   'b': 0.01 * jax.random.normal(kg(), (mid,), jnp.float32)}
    else:
        p['c2'] = _conv_p(kg, mid, mid, 3)
    return p


def init_torch_params(key, N, M):
    kg = _KeyGen(key)
    layers = [('attn', _attention_p(kg, M)), ('deconv', _deconv_p(kg, M, N))]
    for _ in range(3):
        layers.append(('rb', _bottleneck_p(kg, N, groups=N * 2)))
    layers.append(('deconv', _deconv_p(kg, N, N)))
    layers.append(('attn', _attention_p(kg, N)))
    for _ in range(2):
        layers.append(('rb', _bottleneck_p(kg, N, groups=N * 2)))
    layers.append(('rb', _bottleneck_p(kg, N, groups=1)))
    layers.append(('deconv', _deconv_p(kg, N, N)))
    for _ in range(3):
        layers.append(('rb', _bottleneck_p(kg, N, groups=N * 2)))
    layers.append(('deconv', _deconv_p(kg, N, 3)))
    return layers


# -------------------- one-time packing to matmul-ready layout ---------------

def _pack_conv1x1(p):          # torch (Cout, Cin, 1, 1)
    w = jnp.transpose(p['w'][:, :, 0, 0]).astype(jnp.bfloat16)        # (Cin, Cout)
    return w, p['b'].reshape(1, -1).astype(jnp.float32)


def _pack_conv3x3_dense(p):    # torch (Cout, Cin, 3, 3) -> (9, Cin, Cout)
    w = p['w']
    taps = jnp.stack([jnp.transpose(w[:, :, ky, kx]) for (ky, kx) in _TAPS3], 0)
    return taps.astype(jnp.bfloat16), p['b'].reshape(1, -1).astype(jnp.float32)


def _pack_dw3x3(p):            # torch (C, 1, 3, 3) -> (9, 1, C) f32 (VPU path)
    w = p['w'][:, 0]
    taps = jnp.stack([w[:, ky, kx][None, :] for (ky, kx) in _TAPS3], 0)
    return taps.astype(jnp.float32), p['b'].reshape(1, -1).astype(jnp.float32)


def _pack_resblock(p):
    w1, b1 = _pack_conv1x1(p['c1'])
    if p['depthwise']:
        wm, bm = _pack_dw3x3(p['dw'])
    else:
        wm, bm = _pack_conv3x3_dense(p['c2'])
    w3, b3 = _pack_conv1x1(p['c3'])
    return {'w1': w1, 'b1': b1, 'wm': wm, 'bm': bm, 'w3': w3, 'b3': b3,
            'depthwise': p['depthwise']}


def _pack_attention(p):
    pw, pb = _pack_conv1x1(p['conv_b_proj'])
    return {'conv_a': [_pack_resblock(u) for u in p['conv_a']],
            'conv_b_units': [_pack_resblock(u) for u in p['conv_b_units']],
            'proj_w': pw, 'proj_b': pb}


def _pack_deconv(p):           # torch ConvTranspose2d weight (Cin, Cout, 5, 5)
    w, b = p['w'], p['b']
    cout = w.shape[1]
    cpad = _round_up(cout, 8)                      # lane-denser stores for Cout=3
    if cpad != cout:
        w = jnp.pad(w, ((0, 0), (0, cpad - cout), (0, 0), (0, 0)))
        b = jnp.pad(b, ((0, cpad - cout),))
    mats, phase_taps, ti = [], [], 0
    for ry in (0, 1):
        for rx in (0, 1):
            taps = []
            for (dy, ky) in _DECONV_ROW_TAPS[ry]:
                for (dx, kx) in _DECONV_ROW_TAPS[rx]:
                    mats.append(w[:, :, ky, kx])                     # (Cin, cpad)
                    taps.append((ti, dy, dx))
                    ti += 1
            phase_taps.append(tuple(taps))
    return {'w': jnp.stack(mats, 0).astype(jnp.bfloat16),            # (25, Cin, cpad)
            'b': jnp.tile(b.reshape(1, -1), (1, 4)).astype(jnp.float32),
            'phase_taps': tuple(phase_taps), 'cout': cout, 'cpad': cpad}


def pack_params(torch_layers):
    packed = []
    for kind, p in torch_layers:
        if kind == 'attn':
            packed.append((kind, _pack_attention(p)))
        elif kind == 'deconv':
            packed.append((kind, _pack_deconv(p)))
        else:
            packed.append((kind, _pack_resblock(p)))
    return packed


# --------------------------------- forward ---------------------------------

def synthesis_transform_ex(x_nchw, packed_layers, act='gelu'):
    x = jnp.transpose(x_nchw, (0, 2, 3, 1)).astype(jnp.float32)      # NCHW -> NHWC
    B, H, W, _ = x.shape
    xf = _to_flat_padded(x)
    out_nhwc = None
    n_layers = len(packed_layers)
    for idx, (kind, p) in enumerate(packed_layers):
        if kind == 'attn':
            xf = attention_block(xf, p, H, W)
        elif kind == 'deconv':
            final = (idx == n_layers - 1)
            res = deconv_block(xf, p, H, W, final=final)
            H, W = 2 * H, 2 * W
            if final:
                out_nhwc = res
            else:
                xf = res
        else:  # 'rb'
            xf = fused_residual_block(xf, p, H, W, act_mid=act, act_out='none')
    return jnp.transpose(out_nhwc, (0, 3, 1, 2))                     # NHWC -> NCHW


# ----------------------------------- main -----------------------------------

if __name__ == "__main__":
    N, M = 8, 16
    B, H, W = 2, 4, 4
    key = jax.random.PRNGKey(0)
    pkey, xkey = jax.random.split(key)
    layers = pack_params(init_torch_params(pkey, N, M))
    x = jax.random.normal(xkey, (B, M, H, W), jnp.float32)  # latent, NCHW like PyTorch
    y = synthesis_transform_ex(x, layers, act='gelu')
    y = jax.block_until_ready(y)
    assert y.shape == (B, 3, 16 * H, 16 * W), y.shape
    assert bool(jnp.all(jnp.isfinite(y)))
    print("KERNEL_OK")
</pallas_src>

<mosaic_0001>
module attributes {stable_mosaic.version = 11 : i64} {
  func.func @_resblock_kernel(%arg0: i32, %arg1: i32, %arg2: memref<1x1x50x16xf32, #tpu.memory_space<vmem>>, %arg3: memref<1x50x1xf32, #tpu.memory_space<vmem>>, %arg4: memref<16x8xbf16, #tpu.memory_space<vmem>>, %arg5: memref<1x8xf32, #tpu.memory_space<vmem>>, %arg6: memref<9x8x8xbf16, #tpu.memory_space<vmem>>, %arg7: memref<1x8xf32, #tpu.memory_space<vmem>>, %arg8: memref<8x16xbf16, #tpu.memory_space<vmem>>, %arg9: memref<1x16xf32, #tpu.memory_space<vmem>>, %arg10: memref<1x1x36x16xf32, #tpu.memory_space<vmem>>, %arg11: memref<50x8xf32, #tpu.memory_space<vmem>>) attributes {dimension_semantics = [#tpu.dimension_semantics<parallel>, #tpu.dimension_semantics<parallel>], iteration_bounds = array<i64: 2, 1>, scalar_prefetch = 0 : i64, scratch_operands = 1 : i64, tpu.core_type = #tpu.core_type<tc>, window_params = [{transform_indices = @transform_0, window_bounds = array<i64: 1, 1, 50, 16>}, {transform_indices = @transform_1, window_bounds = array<i64: 1, 50, 1>}, {pipeline_mode = #tpu.pipeline_mode<synchronous>, transform_indices = @transform_2, window_bounds = array<i64: 16, 8>}, {pipeline_mode = #tpu.pipeline_mode<synchronous>, transform_indices = @transform_3, window_bounds = array<i64: 1, 8>}, {pipeline_mode = #tpu.pipeline_mode<synchronous>, transform_indices = @transform_4, window_bounds = array<i64: 9, 8, 8>}, {pipeline_mode = #tpu.pipeline_mode<synchronous>, transform_indices = @transform_5, window_bounds = array<i64: 1, 8>}, {pipeline_mode = #tpu.pipeline_mode<synchronous>, transform_indices = @transform_6, window_bounds = array<i64: 8, 16>}, {pipeline_mode = #tpu.pipeline_mode<synchronous>, transform_indices = @transform_7, window_bounds = array<i64: 1, 16>}, {transform_indices = @transform_8, window_bounds = array<i64: 1, 1, 36, 16>}]} {
    %c0 = arith.constant 0 : index
    %c0_0 = arith.constant 0 : index
    %c0_1 = arith.constant 0 : index
    %c0_2 = arith.constant 0 : index
    %0 = vector.load %arg2[%c0, %c0_0, %c0_1, %c0_2] : memref<1x1x50x16xf32, #tpu.memory_space<vmem>>, vector<1x1x50x16xf32>
    %1 = vector.shape_cast %0 : vector<1x1x50x16xf32> to vector<50x16xf32>
    %2 = arith.truncf %1 : vector<50x16xf32> to vector<50x16xbf16>
    %c0_3 = arith.constant 0 : index
    %c0_4 = arith.constant 0 : index
    %3 = vector.load %arg4[%c0_3, %c0_4] : memref<16x8xbf16, #tpu.memory_space<vmem>>, vector<16x8xbf16>
    %cst = arith.constant dense<0.000000e+00> : vector<50x8xf32>
    %4 = tpu.matmul %2, %3, %cst {dimension_numbers = #tpu.dot_dimension_numbers<[1], [0], [0], [1], [0, 0, 1, 1], [], []>} : vector<50x16xbf16>, vector<16x8xbf16>, vector<50x8xf32> -> vector<50x8xf32>
    %c0_5 = arith.constant 0 : index
    %c0_6 = arith.constant 0 : index
    %5 = vector.load %arg5[%c0_5, %c0_6] : memref<1x8xf32, #tpu.memory_space<vmem>>, vector<1x8xf32>
    %6 = vector.broadcast %5 : vector<1x8xf32> to vector<50x8xf32>
    %7 = arith.addf %4, %6 : vector<50x8xf32>
    %cst_7 = arith.constant 0.000000e+00 : f32
    %8 = vector.broadcast %cst_7 : f32 to vector<50x8xf32>
    %9 = arith.maximumf %7, %8 : vector<50x8xf32>
    %c0_8 = arith.constant 0 : index
    %c0_9 = arith.constant 0 : index
    %c0_10 = arith.constant 0 : index
    %10 = vector.load %arg3[%c0_8, %c0_9, %c0_10] : memref<1x50x1xf32, #tpu.memory_space<vmem>>, vector<1x50x1xf32>
    %11 = vector.shape_cast %10 : vector<1x50x1xf32> to vector<50x1xf32>
    %cst_11 = arith.constant 5.000000e-01 : f32
    %12 = vector.broadcast %cst_11 : f32 to vector<50x1xf32>
    %13 = arith.cmpf ogt, %11, %12 : vector<50x1xf32>
    %cst_12 = arith.constant 0.000000e+00 : f32
    %14 = vector.shape_cast %13 : vector<50x1xi1> to vector<50x1xi1>
    %15 = vector.broadcast %14 : vector<50x1xi1> to vector<50x8xi1>
    %16 = vector.broadcast %cst_12 : f32 to vector<50x8xf32>
    %17 = arith.select %15, %9, %16 : vector<50x8xi1>, vector<50x8xf32>
    %c0_13 = arith.constant 0 : index
    %c0_14 = arith.constant 0 : index
    %18 = vector.load %arg11[%c0_13, %c0_14] : memref<50x8xf32, #tpu.memory_space<vmem>>, vector<50x8xf32>
    tpu.vector_store %arg11[%c0_13, %c0_14], %17 {strides = array<i32>} : memref<50x8xf32, #tpu.memory_space<vmem>>, vector<50x8xf32>,
    %cst_15 = arith.constant 0.000000e+00 : f32
    %19 = vector.broadcast %cst_15 : f32 to vector<36x8xf32>
    %c0_16 = arith.constant 0 : index
    %c0_17 = arith.constant 0 : index
    %20 = vector.load %arg11[%c0_16, %c0_17] : memref<50x8xf32, #tpu.memory_space<vmem>>, vector<36x8xf32>
    %21 = arith.truncf %20 : vector<36x8xf32> to vector<36x8xbf16>
    %c0_18 = arith.constant 0 : index
    %c0_19 = arith.constant 0 : index
    %c0_20 = arith.constant 0 : index
    %22 = vector.load %arg6[%c0_18, %c0_19, %c0_20] : memref<9x8x8xbf16, #tpu.memory_space<vmem>>, vector<1x8x8xbf16>
    %23 = vector.shape_cast %22 : vector<1x8x8xbf16> to vector<8x8xbf16>
    %cst_21 = arith.constant dense<0.000000e+00> : vector<36x8xf32>
    %24 = tpu.matmul %21, %23, %cst_21 {dimension_numbers = #tpu.dot_dimension_numbers<[1], [0], [0], [1], [0, 0, 1, 1], [], []>} : vector<36x8xbf16>, vector<8x8xbf16>, vector<36x8xf32> -> vector<36x8xf32>
    %25 = arith.addf %19, %24 : vector<36x8xf32>
    %c1 = arith.constant 1 : index
    %c0_22 = arith.constant 0 : index
    %26 = vector.load %arg11[%c1, %c0_22] : memref<50x8xf32, #tpu.memory_space<vmem>>, vector<36x8xf32>
    %27 = arith.truncf %26 : vector<36x8xf32> to vector<36x8xbf16>
    %c1_23 = arith.constant 1 : index
    %c0_24 = arith.constant 0 : index
    %c0_25 = arith.constant 0 : index
    %28 = vector.load %arg6[%c1_23, %c0_24, %c0_25] : memref<9x8x8xbf16, #tpu.memory_space<vmem>>, vector<1x8x8xbf16>
    %29 = vector.shape_cast %28 : vector<1x8x8xbf16> to vector<8x8xbf16>
    %cst_26 = arith.constant dense<0.000000e+00> : vector<36x8xf32>
    %30 = tpu.matmul %27, %29, %cst_26 {dimension_numbers = #tpu.dot_dimension_numbers<[1], [0], [0], [1], [0, 0, 1, 1], [], []>} : vector<36x8xbf16>, vector<8x8xbf16>, vector<36x8xf32> -> vector<36x8xf32>
    %31 = arith.addf %25, %30 : vector<36x8xf32>
    %c2 = arith.constant 2 : index
    %c0_27 = arith.constant 0 : index
    %32 = vector.load %arg11[%c2, %c0_27] : memref<50x8xf32, #tpu.memory_space<vmem>>, vector<36x8xf32>
    %33 = arith.truncf %32 : vector<36x8xf32> to vector<36x8xbf16>
    %c2_28 = arith.constant 2 : index
    %c0_29 = arith.constant 0 : index
    %c0_30 = arith.constant 0 : index
    %34 = vector.load %arg6[%c2_28, %c0_29, %c0_30] : memref<9x8x8xbf16, #tpu.memory_space<vmem>>, vector<1x8x8xbf16>
    %35 = vector.shape_cast %34 : vector<1x8x8xbf16> to vector<8x8xbf16>
    %cst_31 = arith.constant dense<0.000000e+00> : vector<36x8xf32>
    %36 = tpu.matmul %33, %35, %cst_31 {dimension_numbers = #tpu.dot_dimension_numbers<[1], [0], [0], [1], [0, 0, 1, 1], [], []>} : vector<36x8xbf16>, vector<8x8xbf16>, vector<36x8xf32> -> vector<36x8xf32>
    %37 = arith.addf %31, %36 : vector<36x8xf32>
    %c6 = arith.constant 6 : index
    %c0_32 = arith.constant 0 : index
    %38 = vector.load %arg11[%c6, %c0_32] : memref<50x8xf32, #tpu.memory_space<vmem>>, vector<36x8xf32>
    %39 = arith.truncf %38 : vector<36x8xf32> to vector<36x8xbf16>
    %c3 = arith.constant 3 : index
    %c0_33 = arith.constant 0 : index
    %c0_34 = arith.constant 0 : index
    %40 = vector.load %arg6[%c3, %c0_33, %c0_34] : memref<9x8x8xbf16, #tpu.memory_space<vmem>>, vector<1x8x8xbf16>
    %41 = vector.shape_cast %40 : vector<1x8x8xbf16> to vector<8x8xbf16>
    %cst_35 = arith.constant dense<0.000000e+00> : vector<36x8xf32>
    %42 = tpu.matmul %39, %41, %cst_35 {dimension_numbers = #tpu.dot_dimension_numbers<[1], [0], [0], [1], [0, 0, 1, 1], [], []>} : vector<36x8xbf16>, vector<8x8xbf16>, vector<36x8xf32> -> vector<36x8xf32>
    %43 = arith.addf %37, %42 : vector<36x8xf32>
    %c7 = arith.constant 7 : index
    %c0_36 = arith.constant 0 : index
    %44 = vector.load %arg11[%c7, %c0_36] : memref<50x8xf32, #tpu.memory_space<vmem>>, vector<36x8xf32>
    %45 = arith.truncf %44 : vector<36x8xf32> to vector<36x8xbf16>
    %c4 = arith.constant 4 : index
    %c0_37 = arith.constant 0 : index
    %c0_38 = arith.constant 0 : index
    %46 = vector.load %arg6[%c4, %c0_37, %c0_38] : memref<9x8x8xbf16, #tpu.memory_space<vmem>>, vector<1x8x8xbf16>
    %47 = vector.shape_cast %46 : vector<1x8x8xbf16> to vector<8x8xbf16>
    %cst_39 = arith.constant dense<0.000000e+00> : vector<36x8xf32>
    %48 = tpu.matmul %45, %47, %cst_39 {dimension_numbers = #tpu.dot_dimension_numbers<[1], [0], [0], [1], [0, 0, 1, 1], [], []>} : vector<36x8xbf16>, vector<8x8xbf16>, vector<36x8xf32> -> vector<36x8xf32>
    %49 = arith.addf %43, %48 : vector<36x8xf32>
    %c8 = arith.constant 8 : index
    %c0_40 = arith.constant 0 : index
    %50 = vector.load %arg11[%c8, %c0_40] : memref<50x8xf32, #tpu.memory_space<vmem>>, vector<36x8xf32>
    %51 = arith.truncf %50 : vector<36x8xf32> to vector<36x8xbf16>
    %c5 = arith.constant 5 : index
    %c0_41 = arith.constant 0 : index
    %c0_42 = arith.constant 0 : index
    %52 = vector.load %arg6[%c5, %c0_41, %c0_42] : memref<9x8x8xbf16, #tpu.memory_space<vmem>>, vector<1x8x8xbf16>
    %53 = vector.shape_cast %52 : vector<1x8x8xbf16> to vector<8x8xbf16>
    %cst_43 = arith.constant dense<0.000000e+00> : vector<36x8xf32>
    %54 = tpu.matmul %51, %53, %cst_43 {dimension_numbers = #tpu.dot_dimension_numbers<[1], [0], [0], [1], [0, 0, 1, 1], [], []>} : vector<36x8xbf16>, vector<8x8xbf16>, vector<36x8xf32> -> vector<36x8xf32>
    %55 = arith.addf %49, %54 : vector<36x8xf32>
    %c12 = arith.constant 12 : index
    %c0_44 = arith.constant 0 : index
    %56 = vector.load %arg11[%c12, %c0_44] : memref<50x8xf32, #tpu.memory_space<vmem>>, vector<36x8xf32>
    %57 = arith.truncf %56 : vector<36x8xf32> to vector<36x8xbf16>
    %c6_45 = arith.constant 6 : index
    %c0_46 = arith.constant 0 : index
    %c0_47 = arith.constant 0 : index
    %58 = vector.load %arg6[%c6_45, %c0_46, %c0_47] : memref<9x8x8xbf16, #tpu.memory_space<vmem>>, vector<1x8x8xbf16>
    %59 = vector.shape_cast %58 : vector<1x8x8xbf16> to vector<8x8xbf16>
    %cst_48 = arith.constant dense<0.000000e+00> : vector<36x8xf32>
    %60 = tpu.matmul %57, %59, %cst_48 {dimension_numbers = #tpu.dot_dimension_numbers<[1], [0], [0], [1], [0, 0, 1, 1], [], []>} : vector<36x8xbf16>, vector<8x8xbf16>, vector<36x8xf32> -> vector<36x8xf32>
    %61 = arith.addf %55, %60 : vector<36x8xf32>
    %c13 = arith.constant 13 : index
    %c0_49 = arith.constant 0 : index
    %62 = vector.load %arg11[%c13, %c0_49] : memref<50x8xf32, #tpu.memory_space<vmem>>, vector<36x8xf32>
    %63 = arith.truncf %62 : vector<36x8xf32> to vector<36x8xbf16>
    %c7_50 = arith.constant 7 : index
    %c0_51 = arith.constant 0 : index
    %c0_52 = arith.constant 0 : index
    %64 = vector.load %arg6[%c7_50, %c0_51, %c0_52] : memref<9x8x8xbf16, #tpu.memory_space<vmem>>, vector<1x8x8xbf16>
    %65 = vector.shape_cast %64 : vector<1x8x8xbf16> to vector<8x8xbf16>
    %cst_53 = arith.constant dense<0.000000e+00> : vector<36x8xf32>
    %66 = tpu.matmul %63, %65, %cst_53 {dimension_numbers = #tpu.dot_dimension_numbers<[1], [0], [0], [1], [0, 0, 1, 1], [], []>} : vector<36x8xbf16>, vector<8x8xbf16>, vector<36x8xf32> -> vector<36x8xf32>
    %67 = arith.addf %61, %66 : vector<36x8xf32>
    %c14 = arith.constant 14 : index
    %c0_54 = arith.constant 0 : index
    %68 = vector.load %arg11[%c14, %c0_54] : memref<50x8xf32, #tpu.memory_space<vmem>>, vector<36x8xf32>
    %69 = arith.truncf %68 : vector<36x8xf32> to vector<36x8xbf16>
    %c8_55 = arith.constant 8 : index
    %c0_56 = arith.constant 0 : index
    %c0_57 = arith.constant 0 : index
    %70 = vector.load %arg6[%c8_55, %c0_56, %c0_57] : memref<9x8x8xbf16, #tpu.memory_space<vmem>>, vector<1x8x8xbf16>
    %71 = vector.shape_cast %70 : vector<1x8x8xbf16> to vector<8x8xbf16>
    %cst_58 = arith.constant dense<0.000000e+00> : vector<36x8xf32>
    %72 = tpu.matmul %69, %71, %cst_58 {dimension_numbers = #tpu.dot_dimension_numbers<[1], [0], [0], [1], [0, 0, 1, 1], [], []>} : vector<36x8xbf16>, vector<8x8xbf16>, vector<36x8xf32> -> vector<36x8xf32>
    %73 = arith.addf %67, %72 : vector<36x8xf32>
    %c0_59 = arith.constant 0 : index
    %c0_60 = arith.constant 0 : index
    %74 = vector.load %arg7[%c0_59, %c0_60] : memref<1x8xf32, #tpu.memory_space<vmem>>, vector<1x8xf32>
    %75 = vector.broadcast %74 : vector<1x8xf32> to vector<36x8xf32>
    %76 = arith.addf %73, %75 : vector<36x8xf32>
    %cst_61 = arith.constant 0.000000e+00 : f32
    %77 = vector.broadcast %cst_61 : f32 to vector<36x8xf32>
    %78 = arith.maximumf %76, %77 : vector<36x8xf32>
    %79 = arith.truncf %78 : vector<36x8xf32> to vector<36x8xbf16>
    %c0_62 = arith.constant 0 : index
    %c0_63 = arith.constant 0 : index
    %80 = vector.load %arg8[%c0_62, %c0_63] : memref<8x16xbf16, #tpu.memory_space<vmem>>, vector<8x16xbf16>
    %cst_64 = arith.constant dense<0.000000e+00> : vector<36x16xf32>
    %81 = tpu.matmul %79, %80, %cst_64 {dimension_numbers = #tpu.dot_dimension_numbers<[1], [0], [0], [1], [0, 0, 1, 1], [], []>} : vector<36x8xbf16>, vector<8x16xbf16>, vector<36x16xf32> -> vector<36x16xf32>
    %c0_65 = arith.constant 0 : index
    %c0_66 = arith.constant 0 : index
    %82 = vector.load %arg9[%c0_65, %c0_66] : memref<1x16xf32, #tpu.memory_space<vmem>>, vector<1x16xf32>
    %83 = vector.broadcast %82 : vector<1x16xf32> to vector<36x16xf32>
    %84 = arith.addf %81, %83 : vector<36x16xf32>
    %c0_67 = arith.constant 0 : index
    %c0_68 = arith.constant 0 : index
    %c7_69 = arith.constant 7 : index
    %c0_70 = arith.constant 0 : index
    %85 = vector.load %arg2[%c0_67, %c0_68, %c7_69, %c0_70] : memref<1x1x50x16xf32, #tpu.memory_space<vmem>>, vector<1x1x36x16xf32>
    %86 = vector.shape_cast %85 : vector<1x1x36x16xf32> to vector<36x16xf32>
    %87 = arith.addf %84, %86 : vector<36x16xf32>
    %cst_71 = arith.constant 0.000000e+00 : f32
    %88 = vector.broadcast %cst_71 : f32 to vector<36x16xf32>
    %89 = arith.maximumf %87, %88 : vector<36x16xf32>
    %c0_72 = arith.constant 0 : index
    %c7_73 = arith.constant 7 : index
    %c0_74 = arith.constant 0 : index
    %90 = vector.load %arg3[%c0_72, %c7_73, %c0_74] : memref<1x50x1xf32, #tpu.memory_space<vmem>>, vector<1x36x1xf32>
    %91 = vector.shape_cast %90 : vector<1x36x1xf32> to vector<36x1xf32>
    %cst_75 = arith.constant 5.000000e-01 : f32
    %92 = vector.broadcast %cst_75 : f32 to vector<36x1xf32>
    %93 = arith.cmpf ogt, %91, %92 : vector<36x1xf32>
    %cst_76 = arith.constant 0.000000e+00 : f32
    %94 = vector.shape_cast %93 : vector<36x1xi1> to vector<36x1xi1>
    %95 = vector.broadcast %94 : vector<36x1xi1> to vector<36x16xi1>
    %96 = vector.broadcast %cst_76 : f32 to vector<36x16xf32>
    %97 = arith.select %95, %89, %96 : vector<36x16xi1>, vector<36x16xf32>
    %c0_77 = arith.constant 0 : index
    %c0_78 = arith.constant 0 : index
    %c0_79 = arith.constant 0 : index
    %c0_80 = arith.constant 0 : index
    %98 = vector.load %arg10[%c0_77, %c0_78, %c0_79, %c0_80] : memref<1x1x36x16xf32, #tpu.memory_space<vmem>>, vector<1x1x36x16xf32>
    %99 = vector.shape_cast %98 : vector<1x1x36x16xf32> to vector<36x16xf32>
    %100 = vector.shape_cast %97 : vector<36x16xf32> to vector<1x1x36x16xf32>
    tpu.vector_store %arg10[%c0_77, %c0_78, %c0_79, %c0_80], %100 {strides = array<i32>} : memref<1x1x36x16xf32, #tpu.memory_space<vmem>>, vector<1x1x36x16xf32>,
    return
  }
  func.func @transform_0(%arg0: i32, %arg1: i32) -> (i32, i32, i32, i32) {
    %c0_i32 = arith.constant 0 : i32
    %c0_i32_0 = arith.constant 0 : i32
    %c0_i32_1 = arith.constant 0 : i32
    return %arg0, %arg1, %c0_i32, %c0_i32_0 : i32, i32, i32, i32
  }
  func.func @transform_1(%arg0: i32, %arg1: i32) -> (i32, i32, i32) {
    %c0_i32 = arith.constant 0 : i32
    %c0_i32_0 = arith.constant 0 : i32
    %c0_i32_1 = arith.constant 0 : i32
    return %arg1, %c0_i32, %c0_i32_0 : i32, i32, i32
  }
  func.func @transform_2(%arg0: i32, %arg1: i32) -> (i32, i32) {
    %c0_i32 = arith.constant 0 : i32
    %c0_i32_0 = arith.constant 0 : i32
    %c0_i32_1 = arith.constant 0 : i32
    return %c0_i32, %c0_i32_0 : i32, i32
  }
  func.func @transform_3(%arg0: i32, %arg1: i32) -> (i32, i32) {
    %c0_i32 = arith.constant 0 : i32
    %c0_i32_0 = arith.constant 0 : i32
    %c0_i32_1 = arith.constant 0 : i32
    return %c0_i32, %c0_i32_0 : i32, i32
  }
  func.func @transform_4(%arg0: i32, %arg1: i32) -> (i32, i32, i32) {
    %c0_i32 = arith.constant 0 : i32
    %c0_i32_0 = arith.constant 0 : i32
    %c0_i32_1 = arith.constant 0 : i32
    %c0_i32_2 = arith.constant 0 : i32
    return %c0_i32, %c0_i32_0, %c0_i32_1 : i32, i32, i32
  }
  func.func @transform_5(%arg0: i32, %arg1: i32) -> (i32, i32) {
    %c0_i32 = arith.constant 0 : i32
    %c0_i32_0 = arith.constant 0 : i32
    %c0_i32_1 = arith.constant 0 : i32
    return %c0_i32, %c0_i32_0 : i32, i32
  }
  func.func @transform_6(%arg0: i32, %arg1: i32) -> (i32, i32) {
    %c0_i32 = arith.constant 0 : i32
    %c0_i32_0 = arith.constant 0 : i32
    %c0_i32_1 = arith.constant 0 : i32
    return %c0_i32, %c0_i32_0 : i32, i32
  }
  func.func @transform_7(%arg0: i32, %arg1: i32) -> (i32, i32) {
    %c0_i32 = arith.constant 0 : i32
    %c0_i32_0 = arith.constant 0 : i32
    %c0_i32_1 = arith.constant 0 : i32
    return %c0_i32, %c0_i32_0 : i32, i32
  }
  func.func @transform_8(%arg0: i32, %arg1: i32) -> (i32, i32, i32, i32) {
    %c0_i32 = arith.constant 0 : i32
    %c0_i32_0 = arith.constant 0 : i32
    %c0_i32_1 = arith.constant 0 : i32
    return %arg0, %arg1, %c0_i32, %c0_i32_0 : i32, i32, i32, i32
  }
}

</mosaic_0001>

<llo_original>
// kernel: tpu_custom_call.1
$region0: #{tpu_custom_call.1}
  #allocation0 [shape = 'u32[]', space=smem, size = 0x4, offset = 0x4, fixed_abs, tag = 'smem constant byte address 0x4 - core index']
  #allocation1 [shape = 'u32[144,128]{1,0:T(1,128)}', space=vmem, size = 0x12000, scoped, tag = 'internal scratch']
  #allocation2 [shape = 'f32[50,8]{1,0:T(8,128)}', space=vmem, size = 0x7000, scoped, tag = 'scratch operand']
  %s0 = inlined_call_operand.vmem [shape: f32[2,1,50,16], index: 0, kind: input, shape index: {}]
  %s1 = inlined_call_operand.vmem [shape: f32[1,50,1], index: 1, kind: input, shape index: {}]
  %s2 = inlined_call_operand.vmem [shape: bf16[16,8], index: 2, kind: input, shape index: {}]
  %s3 = inlined_call_operand.vmem [shape: f32[1,8], index: 3, kind: input, shape index: {}]
  %s4 = inlined_call_operand.vmem [shape: bf16[9,8,8], index: 4, kind: input, shape index: {}]
  %s5 = inlined_call_operand.vmem [shape: f32[1,8], index: 5, kind: input, shape index: {}]
  %s6 = inlined_call_operand.vmem [shape: bf16[8,16], index: 6, kind: input, shape index: {}]
  %s7 = inlined_call_operand.vmem [shape: f32[1,16], index: 7, kind: input, shape index: {}]
  %s8 = inlined_call_operand.vmem [shape: f32[2,1,36,16], index: 8, kind: output, shape index: {}]
  %s9 = sld [smem:[#allocation0]]
  $region65: #{tpu_custom_call.1} parent=0
    _
  %s11 = ssub.s32 1, %s9
  %s12 = scalar_select 0, %s11, %s9
  loop: start=0, step=1, limit=4
  $region2: #{tpu_custom_call.1} parent=0 // loop_pre_header
    _
  $region3: #{tpu_custom_call.1} parent=0 // loop_header
    %s14 = sphi 0, %s18
    %p15 = scmp.ge.s32.totalorder %s14, 4
    %s21 = sphi 0, %s33
    %s22 = sphi 0, %s29
    %s23 = sphi 0, %s21
    %s24 = sphi 0, %s22
    %s25 = sphi 0, %s23
    %s26 = sphi 0, %s24
    %s38 = sphi 0, %s40
    %s41 = sphi 0, %s38
    %s42 = sphi 0, %s41
    %s58 = sphi 0, %s42
    %s64 = sphi 0, %s66
    %s67 = sphi 0, %s64
    %s68 = sphi 0, %s67
    %s84 = sphi 0, %s68
    %s88 = sphi 0, %s88
    %s90 = sphi 0, %s88
    %s91 = sphi 0, %s90
    %s105 = sphi 0, %s91
    %s109 = sphi 0, %s109
    %s111 = sphi 0, %s109
    %s112 = sphi 0, %s111
    %s126 = sphi 0, %s112
    %s130 = sphi 0, %s130
    %s132 = sphi 0, %s130
    %s133 = sphi 0, %s132
    %s147 = sphi 0, %s133
    %s151 = sphi 0, %s151
    %s153 = sphi 0, %s151
    %s154 = sphi 0, %s153
    %s168 = sphi 0, %s154
    %s172 = sphi 0, %s172
    %s174 = sphi 0, %s172
    %s175 = sphi 0, %s174
    %s189 = sphi 0, %s175
    %s193 = sphi 0, %s193
    %s195 = sphi 0, %s193
    %s196 = sphi 0, %s195
    %s210 = sphi 0, %s196
    %s218 = sphi 0, %s220
    %s221 = sphi 0, %s218
    %s222 = sphi 0, %s221
    %s238 = sphi 0, %s222
  $region4: #{tpu_custom_call.1} parent=0 // loop_header_branch
    %17 = sbr.rel (%p15) target = $region8
  $region5: #{tpu_custom_call.1} parent=0 // loop_body
    %s19 = ssub.s32 %s14, 1
    %s20 = ssub.s32 %s14, 2
    %s27 = sadd.s32 1, %s22
    %p28 = scmp.ge.s32.totalorder %s27, 1
    %s29 = scalar_select %p28, 0, %s27
    %s30 = sadd.s32 1, %s21
    %s31 = scalar_select %p28, %s30, %s21
    %p32 = scmp.ge.s32.totalorder %s31, 2
    %s33 = scalar_select %p32, 0, %s31
    %s34 = ssub.s32 %s21, %s33
    %s35 = ssub.s32 %s22, %s29
    %s36 = sor.u32 %s34, %s35
    %p37 = scmp.eq.s32.totalorder %s36, 0
    %s39 = sadd.s32 %s38, 1
    %s40 = scalar_select %p37, %s38, %s39
    %p43 = pneg %p37
    %p44 = scmp.eq.s32.totalorder %s14, 1
    %p45 = por %p43, %p44
    %p46 = scmp.ne.s32.totalorder %s38, %s41
    %p47 = scmp.eq.s32.totalorder %s14, 0
    %p48 = por %p46, %p47
    %p49 = scmp.ne.s32.totalorder %s38, %s41
    %p50 = scmp.eq.s32.totalorder %s19, 1
    %p51 = por %p49, %p50
    %p52 = scmp.ne.s32.totalorder %s41, %s42
    %p53 = scmp.eq.s32.totalorder %s19, 0
    %p54 = por %p52, %p53
    %p55 = scmp.ne.s32.totalorder %s41, %s42
    %p56 = scmp.eq.s32.totalorder %s20, 1
    %p57 = por %p55, %p56
    %p59 = scmp.ne.s32.totalorder %s42, %s58
    %p60 = scmp.eq.s32.totalorder %s20, 0
    %p61 = por %p59, %p60
    %s62 = ssub.s32 %s22, %s29
    %p63 = scmp.eq.s32.totalorder %s62, 0
    %s65 = sadd.s32 %s64, 1
    %s66 = scalar_select %p63, %s64, %s65
    %p69 = pneg %p63
    %p70 = scmp.eq.s32.totalorder %s14, 1
    %p71 = por %p69, %p70
    %p72 = scmp.ne.s32.totalorder %s64, %s67
    %p73 = scmp.eq.s32.totalorder %s14, 0
    %p74 = por %p72, %p73
    %p75 = scmp.ne.s32.totalorder %s64, %s67
    %p76 = scmp.eq.s32.totalorder %s19, 1
    %p77 = por %p75, %p76
    %p78 = scmp.ne.s32.totalorder %s67, %s68
    %p79 = scmp.eq.s32.totalorder %s19, 0
    %p80 = por %p78, %p79
    %p81 = scmp.ne.s32.totalorder %s67, %s68
    %p82 = scmp.eq.s32.totalorder %s20, 1
    %p83 = por %p81, %p82
    %p85 = scmp.ne.s32.totalorder %s68, %s84
    %p86 = scmp.eq.s32.totalorder %s20, 0
    %p87 = por %p85, %p86
    %s89 = sadd.s32 %s88, 1
    %p92 = scmp.eq.s32.totalorder %s14, 1
    %p93 = scmp.ne.s32.totalorder %s88, %s90
    %p94 = scmp.eq.s32.totalorder %s14, 0
    %p95 = por %p93, %p94
    %p96 = scmp.ne.s32.totalorder %s88, %s90
    %p97 = scmp.eq.s32.totalorder %s19, 1
    %p98 = por %p96, %p97
    %p99 = scmp.ne.s32.totalorder %s90, %s91
    %p100 = scmp.eq.s32.totalorder %s19, 0
    %p101 = por %p99, %p100
    %p102 = scmp.ne.s32.totalorder %s90, %s91
    %p103 = scmp.eq.s32.totalorder %s20, 1
    %p104 = por %p102, %p103
    %p106 = scmp.ne.s32.totalorder %s91, %s105
    %p107 = scmp.eq.s32.totalorder %s20, 0
    %p108 = por %p106, %p107
    %s110 = sadd.s32 %s109, 1
    %p113 = scmp.eq.s32.totalorder %s14, 1
    %p114 = scmp.ne.s32.totalorder %s109, %s111
    %p115 = scmp.eq.s32.totalorder %s14, 0
    %p116 = por %p114, %p115
    %p117 = scmp.ne.s32.totalorder %s109, %s111
    %p118 = scmp.eq.s32.totalorder %s19, 1
    %p119 = por %p117, %p118
    %p120 = scmp.ne.s32.totalorder %s111, %s112
    %p121 = scmp.eq.s32.totalorder %s19, 0
    %p122 = por %p120, %p121
    %p123 = scmp.ne.s32.totalorder %s111, %s112
    %p124 = scmp.eq.s32.totalorder %s20, 1
    %p125 = por %p123, %p124
    %p127 = scmp.ne.s32.totalorder %s112, %s126
    %p128 = scmp.eq.s32.totalorder %s20, 0
    %p129 = por %p127, %p128
    %s131 = sadd.s32 %s130, 1
    %p134 = scmp.eq.s32.totalorder %s14, 1
    %p135 = scmp.ne.s32.totalorder %s130, %s132
    %p136 = scmp.eq.s32.totalorder %s14, 0
    %p137 = por %p135, %p136
    %p138 = scmp.ne.s32.totalorder %s130, %s132
    %p139 = scmp.eq.s32.totalorder %s19, 1
    %p140 = por %p138, %p139
    %p141 = scmp.ne.s32.totalorder %s132, %s133
    %p142 = scmp.eq.s32.totalorder %s19, 0
    %p143 = por %p141, %p142
    %p144 = scmp.ne.s32.totalorder %s132, %s133
    %p145 = scmp.eq.s32.totalorder %s20, 1
    %p146 = por %p144, %p145
    %p148 = scmp.ne.s32.totalorder %s133, %s147
    %p149 = scmp.eq.s32.totalorder %s20, 0
    %p150 = por %p148, %p149
    %s152 = sadd.s32 %s151, 1
    %p155 = scmp.eq.s32.totalorder %s14, 1
    %p156 = scmp.ne.s32.totalorder %s151, %s153
    %p157 = scmp.eq.s32.totalorder %s14, 0
    %p158 = por %p156, %p157
    %p159 = scmp.ne.s32.totalorder %s151, %s153
    %p160 = scmp.eq.s32.totalorder %s19, 1
    %p161 = por %p159, %p160
    %p162 = scmp.ne.s32.totalorder %s153, %s154
    %p163 = scmp.eq.s32.totalorder %s19, 0
    %p164 = por %p162, %p163
    %p165 = scmp.ne.s32.totalorder %s153, %s154
    %p166 = scmp.eq.s32.totalorder %s20, 1
    %p167 = por %p165, %p166
    %p169 = scmp.ne.s32.totalorder %s154, %s168
    %p170 = scmp.eq.s32.totalorder %s20, 0
    %p171 = por %p169, %p170
    %s173 = sadd.s32 %s172, 1
    %p176 = scmp.eq.s32.totalorder %s14, 1
    %p177 = scmp.ne.s32.totalorder %s172, %s174
    %p178 = scmp.eq.s32.totalorder %s14, 0
    %p179 = por %p177, %p178
    %p180 = scmp.ne.s32.totalorder %s172, %s174
    %p181 = scmp.eq.s32.totalorder %s19, 1
    %p182 = por %p180, %p181
    %p183 = scmp.ne.s32.totalorder %s174, %s175
    %p184 = scmp.eq.s32.totalorder %s19, 0
    %p185 = por %p183, %p184
    %p186 = scmp.ne.s32.totalorder %s174, %s175
    %p187 = scmp.eq.s32.totalorder %s20, 1
    %p188 = por %p186, %p187
    %p190 = scmp.ne.s32.totalorder %s175, %s189
    %p191 = scmp.eq.s32.totalorder %s20, 0
    %p192 = por %p190, %p191
    %s194 = sadd.s32 %s193, 1
    %p197 = scmp.eq.s32.totalorder %s14, 1
    %p198 = scmp.ne.s32.totalorder %s193, %s195
    %p199 = scmp.eq.s32.totalorder %s14, 0
    %p200 = por %p198, %p199
    %p201 = scmp.ne.s32.totalorder %s193, %s195
    %p202 = scmp.eq.s32.totalorder %s19, 1
    %p203 = por %p201, %p202
    %p204 = scmp.ne.s32.totalorder %s195, %s196
    %p205 = scmp.eq.s32.totalorder %s19, 0
    %p206 = por %p204, %p205
    %p207 = scmp.ne.s32.totalorder %s195, %s196
    %p208 = scmp.eq.s32.totalorder %s20, 1
    %p209 = por %p207, %p208
    %p211 = scmp.ne.s32.totalorder %s196, %s210
    %p212 = scmp.eq.s32.totalorder %s20, 0
    %p213 = por %p211, %p212
    %s214 = ssub.s32 %s21, %s33
    %s215 = ssub.s32 %s22, %s29
    %s216 = sor.u32 %s214, %s215
    %p217 = scmp.eq.s32.totalorder %s216, 0
    %s219 = sadd.s32 %s218, 1
    %s220 = scalar_select %p217, %s218, %s219
    %p223 = pneg %p217
    %p224 = scmp.eq.s32.totalorder %s14, 1
    %p225 = por %p223, %p224
    %p226 = scmp.ne.s32.totalorder %s218, %s221
    %p227 = scmp.eq.s32.totalorder %s14, 0
    %p228 = por %p226, %p227
    %p229 = scmp.ne.s32.totalorder %s218, %s221
    %p230 = scmp.eq.s32.totalorder %s19, 1
    %p231 = por %p229, %p230
    %p232 = scmp.ne.s32.totalorder %s221, %s222
    %p233 = scmp.eq.s32.totalorder %s19, 0
    %p234 = por %p232, %p233
    %p235 = scmp.ne.s32.totalorder %s221, %s222
    %p236 = scmp.eq.s32.totalorder %s20, 1
    %p237 = por %p235, %p236
    %p239 = scmp.ne.s32.totalorder %s222, %s238
    %p240 = scmp.eq.s32.totalorder %s20, 0
    %p241 = por %p239, %p240
    %p242 = scmp.le.s32.totalorder 1, %s14
    %p243 = scmp.lt.s32.totalorder %s14, 3
    %p244 = pnand %p242, %p243
    %p245 = pneg %p244
    // Predicated region
    $region9: #{tpu_custom_call.1} parent=5 // pred_check
      _
    $region10: #{tpu_custom_call.1} parent=5 // pred_check_branch
      %247 = sbr.rel (%p244) target = $region12
    $region11: #{tpu_custom_call.1} parent=5 // pred_region
      %s248 = ssub.s32 %s14, 1
      // Predicated region
      $region13: #{tpu_custom_call.1} parent=11 // pred_check
        %p249 = pneg %p80
      $region14: #{tpu_custom_call.1} parent=11 // pred_check_branch
        %251 = sbr.rel (%p249) target = $region16
      $region15: #{tpu_custom_call.1} parent=11 // pred_region
        %p252 = scmp.lt.s32.totalorder %s24, 0
        %s253 = scalar_select %p252, %s24, 0
        %s254 = smul.addr %s253, 7
        %s255 = smul.addr %s254, 8
        %s256 = scalar_lea.vmem %s1, %s255
      $region16: #{tpu_custom_call.1} parent=11 // pred_fallthru
        _
      // Predicated region
      $region17: #{tpu_custom_call.1} parent=11 // pred_check
        %p257 = pneg %p101
      $region18: #{tpu_custom_call.1} parent=11 // pred_check_branch
        %259 = sbr.rel (%p257) target = $region20
      $region19: #{tpu_custom_call.1} parent=11 // pred_region
        _
      $region20: #{tpu_custom_call.1} parent=11 // pred_fallthru
        _
      // Predicated region
      $region21: #{tpu_custom_call.1} parent=11 // pred_check
        %p260 = pneg %p122
      $region22: #{tpu_custom_call.1} parent=11 // pred_check_branch
        %262 = sbr.rel (%p260) target = $region24
      $region23: #{tpu_custom_call.1} parent=11 // pred_region
        _
      $region24: #{tpu_custom_call.1} parent=11 // pred_fallthru
        _
      // Predicated region
      $region25: #{tpu_custom_call.1} parent=11 // pred_check
        %p263 = pneg %p143
      $region26: #{tpu_custom_call.1} parent=11 // pred_check_branch
        %265 = sbr.rel (%p263) target = $region28
      $region27: #{tpu_custom_call.1} parent=11 // pred_region
        _
      $region28: #{tpu_custom_call.1} parent=11 // pred_fallthru
        _
      // Predicated region
      $region29: #{tpu_custom_call.1} parent=11 // pred_check
        %p266 = pneg %p164
      $region30: #{tpu_custom_call.1} parent=11 // pred_check_branch
        %268 = sbr.rel (%p266) target = $region32
      $region31: #{tpu_custom_call.1} parent=11 // pred_region
        _
      $region32: #{tpu_custom_call.1} parent=11 // pred_fallthru
        _
      // Predicated region
      $region33: #{tpu_custom_call.1} parent=11 // pred_check
        %p269 = pneg %p185
      $region34: #{tpu_custom_call.1} parent=11 // pred_check_branch
        %271 = sbr.rel (%p269) target = $region36
      $region35: #{tpu_custom_call.1} parent=11 // pred_region
        _
      $region36: #{tpu_custom_call.1} parent=11 // pred_fallthru
        _
      // Predicated region
      $region37: #{tpu_custom_call.1} parent=11 // pred_check
        %p272 = pneg %p206
      $region38: #{tpu_custom_call.1} parent=11 // pred_check_branch
        %274 = sbr.rel (%p272) target = $region40
      $region39: #{tpu_custom_call.1} parent=11 // pred_region
        _
      $region40: #{tpu_custom_call.1} parent=11 // pred_fallthru
        _
    $region12: #{tpu_custom_call.1} parent=5 // pred_fallthru
      _
    %p275 = scmp.lt.s32.totalorder %s14, 2
    // Predicated region
    $region41: #{tpu_custom_call.1} parent=5 // pred_check
      %p276 = pneg %p275
    $region42: #{tpu_custom_call.1} parent=5 // pred_check_branch
      %278 = sbr.rel (%p276) target = $region44
    $region43: #{tpu_custom_call.1} parent=5 // pred_region
      // Predicated region
      $region45: #{tpu_custom_call.1} parent=43 // pred_check
        %p279 = pneg %p48
      $region46: #{tpu_custom_call.1} parent=43 // pred_check_branch
        %281 = sbr.rel (%p279) target = $region48
      $region47: #{tpu_custom_call.1} parent=43 // pred_region
        %p282 = scmp.lt.s32.totalorder %s21, 1
        %s283 = scalar_select %p282, %s21, 1
        %p284 = scmp.lt.s32.totalorder %s22, 0
        %s285 = scalar_select %p284, %s22, 0
        %s286 = smul.addr %s285, 7
        %s287 = smul.addr %s283, 7
        %s288 = sadd.s32 %s286, %s287
        %s289 = smul.addr %s288, 8
        %s290 = scalar_lea.vmem %s0, %s289
      $region48: #{tpu_custom_call.1} parent=43 // pred_fallthru
        _
    $region44: #{tpu_custom_call.1} parent=5 // pred_fallthru
      _
    %p291 = scmp.le.s32.totalorder 1, %s14
    %p292 = scmp.lt.s32.totalorder %s14, 3
    %p293 = pnand %p291, %p292
    %p294 = pneg %p293
    // Predicated region
    $region49: #{tpu_custom_call.1} parent=5 // pred_check
      _
    $region50: #{tpu_custom_call.1} parent=5 // pred_check_branch
      %296 = sbr.rel (%p293) target = $region52
    $region51: #{tpu_custom_call.1} parent=5 // pred_region
      %s297 = ssub.s32 %s14, 1
      %p298 = scmp.lt.s32.totalorder %s23, 1
      %s299 = scalar_select %p298, %s23, 1
      %p300 = scmp.lt.s32.totalorder %s24, 0
      %s301 = scalar_select %p300, %s24, 0
      %s302 = smul.addr %s301, 7
      %s303 = smul.addr %s299, 7
      %s304 = sadd.s32 %s302, %s303
      %s305 = smul.addr %s304, 8
      %s306 = scalar_lea.vmem %s0, %s305
      %p307 = pneg %p54
      %p308 = pneg %p51
      %p309 = scmp.lt.s32.totalorder %s24, 0
      %s310 = scalar_select %p309, %s24, 0
      %s311 = smul.addr %s310, 7
      %s312 = smul.addr %s311, 8
      %s313 = scalar_lea.vmem %s1, %s312
      %p314 = pneg %p80
      %p315 = pneg %p77
      %p316 = pneg %p101
      %p317 = pneg %p98
      %p318 = pneg %p122
      %p319 = pneg %p119
      %p320 = pneg %p143
      %p321 = pneg %p140
      %p322 = pneg %p164
      %p323 = pneg %p161
      %p324 = pneg %p185
      %p325 = pneg %p182
      %p326 = pneg %p206
      %p327 = pneg %p203
      %p328 = pneg %p234
      %p329 = pneg %p231
      %p330 = scmp.lt.s32.totalorder %s23, 1
      %s331 = scalar_select %p330, %s23, 1
      %p332 = scmp.lt.s32.totalorder %s24, 0
      %s333 = scalar_select %p332, %s24, 0
      %s334 = smul.addr %s333, 5
      %s335 = smul.addr %s331, 5
      %s336 = sadd.s32 %s334, %s335
      %s337 = smul.addr %s336, 8
      %s338 = scalar_lea.vmem %s8, %s337
      %p339 = scmp.lt.s32.totalorder %s23, 1
      %s340 = scalar_select %p339, %s23, 1
      %p341 = scmp.lt.s32.totalorder %s24, 0
      %s342 = scalar_select %p341, %s24, 0
      %s343 = smul.addr %s342, 7
      %s344 = smul.addr %s340, 7
      %s345 = sadd.s32 %s343, %s344
      %s346 = smul.addr %s345, 8
      %s347 = scalar_lea.vmem %s0, %s346
      %p348 = scmp.lt.s32.totalorder %s24, 0
      %s349 = scalar_select %p348, %s24, 0
      %s350 = smul.addr %s349, 7
      %s351 = smul.addr %s350, 8
      %s352 = scalar_lea.vmem %s1, %s351
      %p353 = scmp.lt.s32.totalorder %s23, 1
      %s354 = scalar_select %p353, %s23, 1
      %p355 = scmp.lt.s32.totalorder %s24, 0
      %s356 = scalar_select %p355, %s24, 0
      %s357 = smul.addr %s356, 5
      %s358 = smul.addr %s354, 5
      %s359 = sadd.s32 %s357, %s358
      %s360 = smul.addr %s359, 8
      %s361 = scalar_lea.vmem %s8, %s360
      %v363 = vld [vmem:[%s347] sm:$0xff]
      %v364 = vld [vmem:[%s347 + $0x8] sm:$0xff]
      %v365 = vld [vmem:[%s347 + $0x10] sm:$0xff]
      %v366 = vld [vmem:[%s347 + $0x18] sm:$0xff]
      %v367 = vld [vmem:[%s347 + $0x20] sm:$0xff]
      %v368 = vld [vmem:[%s347 + $0x28] sm:$0xff]
      %v369 = vld [vmem:[%s347 + $0x30] sm:$0x3]
      %v370 = vpack.c.bf16 %v364, %v363
      %v371 = vpack.c.bf16 %v366, %v365
      %v372 = vpack.c.bf16 %v368, %v367
      %v373 = vpack.c.bf16 %v369, %v369
      %v374 = vld [vmem:[%s2] sm:$0xf]
      %v375 = vld [vmem:[%s2 + $0x4] sm:$0xf]
      %v376 = vld [vmem:[%s3] sm:$0x1]
      %v378 = vlaneseq
      %v379 = vshrl.u32 %v378, 7
      %v380 = vsub.s32 0, %v379
      %v381 = vrot.slane %v376, %v380
      %v385 = vunpack.c.l.b16 %v374
      %v386 = vunpack.c.l.b16 %v375
      %v387 = vpack.c.b16 %v386, %v385
      %vm389 = vcmask 130048
      %v391 = vsel %vm389, %v370, 0
      %v394 = vsel %vm389, %v371, 0
      %v397 = vsel %vm389, %v372, 0
      %v400 = vsel %vm389, %v373, 0
      %402 = vmatprep.subr.bf16.mxu0 0
      %403 = vmatpush1.bf16.msra.mxu0 %v387
      %404 = vmatprep.subr.bf16.mxu0 0
      %405 = vmatpush1.bf16.msra.mxu0 0
      %406 = vmatprep.subr.bf16.mxu0 0
      %407 = vmatpush1.bf16.msra.mxu0 0
      %408 = vmatprep.subr.bf16.mxu0 0
      %409 = vmatpush1.bf16.msra.mxu0 0
      %410 = vmatprep.subr.bf16.mxu0 0
      %411 = vmatpush1.bf16.msra.mxu0 0
      %412 = vmatprep.subr.bf16.mxu0 0
      %413 = vmatpush1.bf16.msra.mxu0 0
      %414 = vmatprep.subr.bf16.mxu0 0
      %415 = vmatpush1.bf16.msra.mxu0 0
      %416 = vmatprep.subr.bf16.mxu0 0
      %417 = vmatpush1.bf16.msra.mxu0 0
      %418 = vmatprep.subr.bf16.mxu0 0
      %419 = vmatpush1.bf16.msra.mxu0 0
      %420 = vmatprep.subr.bf16.mxu0 0
      %421 = vmatpush1.bf16.msra.mxu0 0
      %422 = vmatprep.subr.bf16.mxu0 0
      %423 = vmatpush1.bf16.msra.mxu0 0
      %424 = vmatprep.subr.bf16.mxu0 0
      %425 = vmatpush1.bf16.msra.mxu0 0
      %426 = vmatprep.subr.bf16.mxu0 0
      %427 = vmatpush1.bf16.msra.mxu0 0
      %428 = vmatprep.subr.bf16.mxu0 0
      %429 = vmatpush1.bf16.msra.mxu0 0
      %430 = vmatprep.subr.bf16.mxu0 0
      %431 = vmatpush1.bf16.msra.mxu0 0
      %432 = vmatprep.subr.bf16.mxu0 0
      %433 = vmatpush1.bf16.msra.mxu0 0
      %434 = vmatprep.mubr.bf16.mxu0 0
      %435 = vmatmul.mubr.bf16.gmra.mrb[0].mxu0 %v391
      %v436 = vpop.f32.mrb[0].mxu0
      %v437 = vadd.f32 %v381, %v436
      %v438 = vpop.f32.mrb[0].mxu0
      %v439 = vpop.f32.mrb[0].mxu0
      %v440 = vadd.f32 %v381, %v439
      %v441 = vpop.f32.mrb[0].mxu0
      %442 = vmatprep.mubr.bf16.mxu0 0
      %443 = vmatmul.mubr.bf16.gmra.mrb[0].mxu0 %v394
      %v444 = vpop.f32.mrb[0].mxu0
      %v445 = vadd.f32 %v381, %v444
      %v446 = vpop.f32.mrb[0].mxu0
      %v447 = vpop.f32.mrb[0].mxu0
      %v448 = vadd.f32 %v381, %v447
      %v449 = vpop.f32.mrb[0].mxu0
      %450 = vmatprep.mubr.bf16.mxu0 0
      %451 = vmatmul.mubr.bf16.gmra.mrb[0].mxu0 %v397
      %v452 = vpop.f32.mrb[0].mxu0
      %v453 = vadd.f32 %v381, %v452
      %v454 = vpop.f32.mrb[0].mxu0
      %v455 = vpop.f32.mrb[0].mxu0
      %v456 = vadd.f32 %v381, %v455
      %v457 = vpop.f32.mrb[0].mxu0
      %458 = vmatprep.mubr.bf16.mxu0 0
      %459 = vmatmul.mubr.bf16.gmra.mrb[0].mxu0 %v400
      %v460 = vpop.f32.mrb[0].mxu0
      %v461 = vadd.f32 %v381, %v460
      %v462 = vpop.f32.mrb[0].mxu0
      %v463 = vpop.f32.mrb[0].mxu0
      %v464 = vpop.f32.mrb[0].mxu0
      %465 = vdwg.mxu0
      %v466 = vmax.f32 %v437, 0.0
      %v467 = vmax.f32 %v440, 0.0
      %v468 = vmax.f32 %v445, 0.0
      %v469 = vmax.f32 %v448, 0.0
      %v470 = vmax.f32 %v453, 0.0
      %v471 = vmax.f32 %v456, 0.0
      %v472 = vmax.f32 %v461, 0.0
      %v473 = vld [vmem:[%s352] sm:$0xff]
      %v474 = vld [vmem:[%s352 + $0x8] sm:$0xff]
      %v475 = vld [vmem:[%s352 + $0x10] sm:$0xff]
      %v476 = vld [vmem:[%s352 + $0x18] sm:$0xff]
      %v477 = vld [vmem:[%s352 + $0x20] sm:$0xff]
      %v478 = vld [vmem:[%s352 + $0x28] sm:$0xff]
      %v479 = vld [vmem:[%s352 + $0x30] sm:$0x3]
      %vm480 = vcmp.gt.f32.partialorder %v473, 0.5
      %vm481 = vcmp.gt.f32.partialorder %v474, 0.5
      %vm482 = vcmp.gt.f32.partialorder %v475, 0.5
      %vm483 = vcmp.gt.f32.partialorder %v476, 0.5
      %vm484 = vcmp.gt.f32.partialorder %v477, 0.5
      %vm485 = vcmp.gt.f32.partialorder %v478, 0.5
      %vm486 = vcmp.gt.f32.partialorder %v479, 0.5
      %v487 = vsel %vm480, 1, 0
      %v488 = vsel %vm481, 1, 0
      %v489 = vsel %vm482, 1, 0
      %v490 = vsel %vm483, 1, 0
      %v491 = vsel %vm484, 1, 0
      %v492 = vsel %vm485, 1, 0
      %v493 = vsel %vm486, 1, 0
      %494 = vset.pattern.permute.xlu0 0
      %495 = vperm.xlu0 %494, %v487
      %v496 = vpop.permute.xlu0 %495
      %497 = vset.pattern.permute.xlu0 0
      %498 = vperm.xlu0 %497, %v488
      %v499 = vpop.permute.xlu0 %498
      %500 = vset.pattern.permute.xlu0 0
      %501 = vperm.xlu0 %500, %v489
      %v502 = vpop.permute.xlu0 %501
      %503 = vset.pattern.permute.xlu0 0
      %504 = vperm.xlu0 %503, %v490
      %v505 = vpop.permute.xlu0 %504
      %506 = vset.pattern.permute.xlu0 0
      %507 = vperm.xlu0 %506, %v491
      %v508 = vpop.permute.xlu0 %507
      %509 = vset.pattern.permute.xlu0 0
      %510 = vperm.xlu0 %509, %v492
      %v511 = vpop.permute.xlu0 %510
      %512 = vset.pattern.permute.xlu0 0
      %513 = vperm.xlu0 %512, %v493
      %v514 = vpop.permute.xlu0 %513
      %vm515 = vcmp.eq.s32.totalorder %v496, 1
      %vm516 = vcmp.eq.s32.totalorder %v499, 1
      %vm517 = vcmp.eq.s32.totalorder %v502, 1
      %vm518 = vcmp.eq.s32.totalorder %v505, 1
      %vm519 = vcmp.eq.s32.totalorder %v508, 1
      %vm520 = vcmp.eq.s32.totalorder %v511, 1
      %vm521 = vcmp.eq.s32.totalorder %v514, 1
      %v522 = vsel %vm515, %v466, 0.0
      %v523 = vsel %vm516, %v467, 0.0
      %v524 = vsel %vm517, %v468, 0.0
      %v525 = vsel %vm518, %v469, 0.0
      %v526 = vsel %vm519, %v470, 0.0
      %v527 = vsel %vm520, %v471, 0.0
      %v528 = vsel %vm521, %v472, 0.0
      %vm529 = vcmask 64512
      %530 = vst.msk [vmem:[#allocation2] sm:$0xff] %vm529, %v522
      %531 = vst.msk [vmem:[#allocation2 + $0x8] sm:$0xff] %vm529, %v523
      %532 = vst.msk [vmem:[#allocation2 + $0x10] sm:$0xff] %vm529, %v524
      %533 = vst.msk [vmem:[#allocation2 + $0x18] sm:$0xff] %vm529, %v525
      %534 = vst.msk [vmem:[#allocation2 + $0x20] sm:$0xff] %vm529, %v526
      %535 = vst.msk [vmem:[#allocation2 + $0x28] sm:$0xff] %vm529, %v527
      %vm536 = vcmask 58368
      %537 = vst.msk [vmem:[#allocation2 + $0x30] sm:$0x3] %vm536, %v528
      %v538 = vld [vmem:[#allocation2] sm:$0xff]
      %v539 = vld [vmem:[#allocation2 + $0x8] sm:$0xff]
      %v540 = vld [vmem:[#allocation2 + $0x10] sm:$0xff]
      %v541 = vld [vmem:[#allocation2 + $0x18] sm:$0xff]
      %v542 = vld [vmem:[#allocation2 + $0x20] sm:$0xf]
      %v543 = vpack.c.bf16 %v539, %v538
      %v544 = vpack.c.bf16 %v541, %v540
      %v545 = vpack.c.bf16 %v542, %v542
      %v546 = vld [vmem:[%s4] sm:$0xf]
      %v547 = vld [vmem:[#allocation2 + $0x1] sm:$0xff]
      %v548 = vld [vmem:[#allocation2 + $0x9] sm:$0xff]
      %v549 = vld [vmem:[#allocation2 + $0x11] sm:$0xff]
      %v550 = vld [vmem:[#allocation2 + $0x19] sm:$0xff]
      %v551 = vld [vmem:[#allocation2 + $0x21] sm:$0xf]
      %v552 = vpack.c.bf16 %v548, %v547
      %v553 = vpack.c.bf16 %v550, %v549
      %v554 = vpack.c.bf16 %v551, %v551
      %s555 = scalar_lea.vmem %s4, 4
      %v556 = vld [vmem:[%s555] sm:$0xf]
      %v558 = vsel %vm529, %v552, 0
      %v561 = vsel %vm529, %v553, 0
      %v564 = vsel %vm529, %v554, 0
      %vm566 = vcmask 1043456
      %v568 = vsel %vm566, %v556, 0
      %570 = vmatprep.subr.bf16.mxu0 0
      %571 = vmatpush1.bf16.msra.mxu0 %v568
      %572 = vmatprep.subr.bf16.mxu0 0
      %573 = vmatpush1.bf16.msra.mxu0 0
      %574 = vmatprep.subr.bf16.mxu0 0
      %575 = vmatpush1.bf16.msra.mxu0 0
      %576 = vmatprep.subr.bf16.mxu0 0
      %577 = vmatpush1.bf16.msra.mxu0 0
      %578 = vmatprep.subr.bf16.mxu0 0
      %579 = vmatpush1.bf16.msra.mxu0 0
      %580 = vmatprep.subr.bf16.mxu0 0
      %581 = vmatpush1.bf16.msra.mxu0 0
      %582 = vmatprep.subr.bf16.mxu0 0
      %583 = vmatpush1.bf16.msra.mxu0 0
      %584 = vmatprep.subr.bf16.mxu0 0
      %585 = vmatpush1.bf16.msra.mxu0 0
      %586 = vmatprep.subr.bf16.mxu0 0
      %587 = vmatpush1.bf16.msra.mxu0 0
      %588 = vmatprep.subr.bf16.mxu0 0
      %589 = vmatpush1.bf16.msra.mxu0 0
      %590 = vmatprep.subr.bf16.mxu0 0
      %591 = vmatpush1.bf16.msra.mxu0 0
      %592 = vmatprep.subr.bf16.mxu0 0
      %593 = vmatpush1.bf16.msra.mxu0 0
      %594 = vmatprep.subr.bf16.mxu0 0
      %595 = vmatpush1.bf16.msra.mxu0 0
      %596 = vmatprep.subr.bf16.mxu0 0
      %597 = vmatpush1.bf16.msra.mxu0 0
      %598 = vmatprep.subr.bf16.mxu0 0
      %599 = vmatpush1.bf16.msra.mxu0 0
      %600 = vmatprep.subr.bf16.mxu0 0
      %601 = vmatpush1.bf16.msra.mxu0 0
      %602 = vmatprep.mubr.bf16.mxu0 0
      %603 = vmatmul.mubr.bf16.gmra.mrb[0].mxu0 %v558
      %v604 = vpop.f32.mrb[0].mxu0
      %v605 = vadd.f32 0.0, %v604
      %v606 = vpop.f32.mrb[0].mxu0
      %v607 = vpop.f32.mrb[0].mxu0
      %v608 = vadd.f32 0.0, %v607
      %v609 = vpop.f32.mrb[0].mxu0
      %610 = vmatprep.mubr.bf16.mxu0 0
      %611 = vmatmul.mubr.bf16.gmra.mrb[0].mxu0 %v561
      %v612 = vpop.f32.mrb[0].mxu0
      %v613 = vadd.f32 0.0, %v612
      %v614 = vpop.f32.mrb[0].mxu0
      %v615 = vpop.f32.mrb[0].mxu0
      %v616 = vadd.f32 0.0, %v615
      %v617 = vpop.f32.mrb[0].mxu0
      %618 = vmatprep.mubr.bf16.mxu0 0
      %619 = vmatmul.mubr.bf16.gmra.mrb[0].mxu0 %v564
      %v620 = vpop.f32.mrb[0].mxu0
      %v621 = vadd.f32 0.0, %v620
      %v622 = vpop.f32.mrb[0].mxu0
      %v623 = vpop.f32.mrb[0].mxu0
      %v624 = vpop.f32.mrb[0].mxu0
      %625 = vdwg.mxu0
      %v627 = vsel %vm529, %v543, 0
      %v630 = vsel %vm529, %v544, 0
      %v633 = vsel %vm529, %v545, 0
      %v636 = vsel %vm566, %v546, 0
      %638 = vmatprep.subr.bf16.mxu0 0
      %639 = vmatpush1.bf16.msra.mxu0 %v636
      %640 = vmatprep.subr.bf16.mxu0 0
      %641 = vmatpush1.bf16.msra.mxu0 0
      %642 = vmatprep.subr.bf16.mxu0 0
      %643 = vmatpush1.bf16.msra.mxu0 0
      %644 = vmatprep.subr.bf16.mxu0 0
      %645 = vmatpush1.bf16.msra.mxu0 0
      %646 = vmatprep.subr.bf16.mxu0 0
      %647 = vmatpush1.bf16.msra.mxu0 0
      %648 = vmatprep.subr.bf16.mxu0 0
      %649 = vmatpush1.bf16.msra.mxu0 0
      %650 = vmatprep.subr.bf16.mxu0 0
      %651 = vmatpush1.bf16.msra.mxu0 0
      %652 = vmatprep.subr.bf16.mxu0 0
      %653 = vmatpush1.bf16.msra.mxu0 0
      %654 = vmatprep.subr.bf16.mxu0 0
      %655 = vmatpush1.bf16.msra.mxu0 0
      %656 = vmatprep.subr.bf16.mxu0 0
      %657 = vmatpush1.bf16.msra.mxu0 0
      %658 = vmatprep.subr.bf16.mxu0 0
      %659 = vmatpush1.bf16.msra.mxu0 0
      %660 = vmatprep.subr.bf16.mxu0 0
      %661 = vmatpush1.bf16.msra.mxu0 0
      %662 = vmatprep.subr.bf16.mxu0 0
      %663 = vmatpush1.bf16.msra.mxu0 0
      %664 = vmatprep.subr.bf16.mxu0 0
      %665 = vmatpush1.bf16.msra.mxu0 0
      %666 = vmatprep.subr.bf16.mxu0 0
      %667 = vmatpush1.bf16.msra.mxu0 0
      %668 = vmatprep.subr.bf16.mxu0 0
      %669 = vmatpush1.bf16.msra.mxu0 0
      %670 = vmatprep.mubr.bf16.mxu0 0
      %671 = vmatmul.mubr.bf16.gmra.mrb[0].mxu0 %v627
      %v672 = vpop.f32.mrb[0].mxu0
      %v673 = vadd.f32 %v605, %v672
      %v674 = vpop.f32.mrb[0].mxu0
      %v675 = vpop.f32.mrb[0].mxu0
      %v676 = vadd.f32 %v608, %v675
      %v677 = vpop.f32.mrb[0].mxu0
      %678 = vmatprep.mubr.bf16.mxu0 0
      %679 = vmatmul.mubr.bf16.gmra.mrb[0].mxu0 %v630
      %v680 = vpop.f32.mrb[0].mxu0
      %v681 = vadd.f32 %v613, %v680
      %v682 = vpop.f32.mrb[0].mxu0
      %v683 = vpop.f32.mrb[0].mxu0
      %v684 = vadd.f32 %v616, %v683
      %v685 = vpop.f32.mrb[0].mxu0
      %686 = vmatprep.mubr.bf16.mxu0 0
      %687 = vmatmul.mubr.bf16.gmra.mrb[0].mxu0 %v633
      %v688 = vpop.f32.mrb[0].mxu0
      %v689 = vadd.f32 %v621, %v688
      %v690 = vpop.f32.mrb[0].mxu0
      %v691 = vpop.f32.mrb[0].mxu0
      %v692 = vpop.f32.mrb[0].mxu0
      %693 = vdwg.mxu0
      %v694 = vld [vmem:[#allocation2 + $0x2] sm:$0xff]
      %v695 = vld [vmem:[#allocation2 + $0xa] sm:$0xff]
      %v696 = vld [vmem:[#allocation2 + $0x12] sm:$0xff]
      %v697 = vld [vmem:[#allocation2 + $0x1a] sm:$0xff]
      %v698 = vld [vmem:[#allocation2 + $0x22] sm:$0xf]
      %v699 = vpack.c.bf16 %v695, %v694
      %v700 = vpack.c.bf16 %v697, %v696
      %v701 = vpack.c.bf16 %v698, %v698
      %s702 = scalar_lea.vmem %s4, 8
      %v703 = vld [vmem:[%s702] sm:$0xf]
      %v705 = vsel %vm529, %v699, 0
      %v708 = vsel %vm529, %v700, 0
      %v711 = vsel %vm529, %v701, 0
      %v714 = vsel %vm566, %v703, 0
      %716 = vmatprep.subr.bf16.mxu0 0
      %717 = vmatpush1.bf16.msra.mxu0 %v714
      %718 = vmatprep.subr.bf16.mxu0 0
      %719 = vmatpush1.bf16.msra.mxu0 0
      %720 = vmatprep.subr.bf16.mxu0 0
      %721 = vmatpush1.bf16.msra.mxu0 0
      %722 = vmatprep.subr.bf16.mxu0 0
      %723 = vmatpush1.bf16.msra.mxu0 0
      %724 = vmatprep.subr.bf16.mxu0 0
      %725 = vmatpush1.bf16.msra.mxu0 0
      %726 = vmatprep.subr.bf16.mxu0 0
      %727 = vmatpush1.bf16.msra.mxu0 0
      %728 = vmatprep.subr.bf16.mxu0 0
      %729 = vmatpush1.bf16.msra.mxu0 0
      %730 = vmatprep.subr.bf16.mxu0 0
      %731 = vmatpush1.bf16.msra.mxu0 0
      %732 = vmatprep.subr.bf16.mxu0 0
      %733 = vmatpush1.bf16.msra.mxu0 0
      %734 = vmatprep.subr.bf16.mxu0 0
      %735 = vmatpush1.bf16.msra.mxu0 0
      %736 = vmatprep.subr.bf16.mxu0 0
      %737 = vmatpush1.bf16.msra.mxu0 0
      %738 = vmatprep.subr.bf16.mxu0 0
      %739 = vmatpush1.bf16.msra.mxu0 0
      %740 = vmatprep.subr.bf16.mxu0 0
      %741 = vmatpush1.bf16.msra.mxu0 0
      %742 = vmatprep.subr.bf16.mxu0 0
      %743 = vmatpush1.bf16.msra.mxu0 0
      %744 = vmatprep.subr.bf16.mxu0 0
      %745 = vmatpush1.bf16.msra.mxu0 0
      %746 = vmatprep.subr.bf16.mxu0 0
      %747 = vmatpush1.bf16.msra.mxu0 0
      %748 = vmatprep.mubr.bf16.mxu0 0
      %749 = vmatmul.mubr.bf16.gmra.mrb[0].mxu0 %v705
      %v750 = vpop.f32.mrb[0].mxu0
      %v751 = vadd.f32 0.0, %v750
      %v752 = vpop.f32.mrb[0].mxu0
      %v753 = vpop.f32.mrb[0].mxu0
      %v754 = vadd.f32 0.0, %v753
      %v755 = vpop.f32.mrb[0].mxu0
      %756 = vmatprep.mubr.bf16.mxu0 0
      %757 = vmatmul.mubr.bf16.gmra.mrb[0].mxu0 %v708
      %v758 = vpop.f32.mrb[0].mxu0
      %v759 = vadd.f32 0.0, %v758
      %v760 = vpop.f32.mrb[0].mxu0
      %v761 = vpop.f32.mrb[0].mxu0
      %v762 = vadd.f32 0.0, %v761
      %v763 = vpop.f32.mrb[0].mxu0
      %764 = vmatprep.mubr.bf16.mxu0 0
      %765 = vmatmul.mubr.bf16.gmra.mrb[0].mxu0 %v711
      %v766 = vpop.f32.mrb[0].mxu0
      %v767 = vadd.f32 0.0, %v766
      %v768 = vpop.f32.mrb[0].mxu0
      %v769 = vpop.f32.mrb[0].mxu0
      %v770 = vpop.f32.mrb[0].mxu0
      %771 = vdwg.mxu0
      %v772 = vadd.f32 %v673, %v751
      %v773 = vadd.f32 %v676, %v754
      %v774 = vadd.f32 %v681, %v759
      %v775 = vadd.f32 %v684, %v762
      %v776 = vadd.f32 %v689, %v767
      %v777 = vld [vmem:[#allocation2 + $0x6] sm:$0xff]
      %v778 = vld [vmem:[#allocation2 + $0xe] sm:$0xff]
      %v779 = vld [vmem:[#allocation2 + $0x16] sm:$0xff]
      %v780 = vld [vmem:[#allocation2 + $0x1e] sm:$0xff]
      %v781 = vld [vmem:[#allocation2 + $0x26] sm:$0xf]
      %v782 = vpack.c.bf16 %v778, %v777
      %v783 = vpack.c.bf16 %v780, %v779
      %v784 = vpack.c.bf16 %v781, %v781
      %s785 = scalar_lea.vmem %s4, 12
      %v786 = vld [vmem:[%s785] sm:$0xf]
      %v788 = vsel %vm529, %v782, 0
      %v791 = vsel %vm529, %v783, 0
      %v794 = vsel %vm529, %v784, 0
      %v797 = vsel %vm566, %v786, 0
      %799 = vmatprep.subr.bf16.mxu0 0
      %800 = vmatpush1.bf16.msra.mxu0 %v797
      %801 = vmatprep.subr.bf16.mxu0 0
      %802 = vmatpush1.bf16.msra.mxu0 0
      %803 = vmatprep.subr.bf16.mxu0 0
      %804 = vmatpush1.bf16.msra.mxu0 0
      %805 = vmatprep.subr.bf16.mxu0 0
      %806 = vmatpush1.bf16.msra.mxu0 0
      %807 = vmatprep.subr.bf16.mxu0 0
      %808 = vmatpush1.bf16.msra.mxu0 0
      %809 = vmatprep.subr.bf16.mxu0 0
      %810 = vmatpush1.bf16.msra.mxu0 0
      %811 = vmatprep.subr.bf16.mxu0 0
      %812 = vmatpush1.bf16.msra.mxu0 0
      %813 = vmatprep.subr.bf16.mxu0 0
      %814 = vmatpush1.bf16.msra.mxu0 0
      %815 = vmatprep.subr.bf16.mxu0 0
      %816 = vmatpush1.bf16.msra.mxu0 0
      %817 = vmatprep.subr.bf16.mxu0 0
      %818 = vmatpush1.bf16.msra.mxu0 0
      %819 = vmatprep.subr.bf16.mxu0 0
      %820 = vmatpush1.bf16.msra.mxu0 0
      %821 = vmatprep.subr.bf16.mxu0 0
      %822 = vmatpush1.bf16.msra.mxu0 0
      %823 = vmatprep.subr.bf16.mxu0 0
      %824 = vmatpush1.bf16.msra.mxu0 0
      %825 = vmatprep.subr.bf16.mxu0 0
      %826 = vmatpush1.bf16.msra.mxu0 0
      %827 = vmatprep.subr.bf16.mxu0 0
      %828 = vmatpush1.bf16.msra.mxu0 0
      %829 = vmatprep.subr.bf16.mxu0 0
      %830 = vmatpush1.bf16.msra.mxu0 0
      %831 = vmatprep.mubr.bf16.mxu0 0
      %832 = vmatmul.mubr.bf16.gmra.mrb[0].mxu0 %v788
      %v833 = vpop.f32.mrb[0].mxu0
      %v834 = vadd.f32 0.0, %v833
      %v835 = vpop.f32.mrb[0].mxu0
      %v836 = vpop.f32.mrb[0].mxu0
      %v837 = vadd.f32 0.0, %v836
      %v838 = vpop.f32.mrb[0].mxu0
      %839 = vmatprep.mubr.bf16.mxu0 0
      %840 = vmatmul.mubr.bf16.gmra.mrb[0].mxu0 %v791
      %v841 = vpop.f32.mrb[0].mxu0
      %v842 = vadd.f32 0.0, %v841
      %v843 = vpop.f32.mrb[0].mxu0
      %v844 = vpop.f32.mrb[0].mxu0
      %v845 = vadd.f32 0.0, %v844
      %v846 = vpop.f32.mrb[0].mxu0
      %847 = vmatprep.mubr.bf16.mxu0 0
      %848 = vmatmul.mubr.bf16.gmra.mrb[0].mxu0 %v794
      %v849 = vpop.f32.mrb[0].mxu0
      %v850 = vadd.f32 0.0, %v849
      %v851 = vpop.f32.mrb[0].mxu0
      %v852 = vpop.f32.mrb[0].mxu0
      %v853 = vpop.f32.mrb[0].mxu0
      %854 = vdwg.mxu0
      %v855 = vadd.f32 %v772, %v834
      %v856 = vadd.f32 %v773, %v837
      %v857 = vadd.f32 %v774, %v842
      %v858 = vadd.f32 %v775, %v845
      %v859 = vadd.f32 %v776, %v850
      %v860 = vld [vmem:[#allocation2 + $0x7] sm:$0xff]
      %v861 = vld [vmem:[#allocation2 + $0xf] sm:$0xff]
      %v862 = vld [vmem:[#allocation2 + $0x17] sm:$0xff]
      %v863 = vld [vmem:[#allocation2 + $0x1f] sm:$0xff]
      %v864 = vld [vmem:[#allocation2 + $0x27] sm:$0xf]
      %v865 = vpack.c.bf16 %v861, %v860
      %v866 = vpack.c.bf16 %v863, %v862
      %v867 = vpack.c.bf16 %v864, %v864
      %s868 = scalar_lea.vmem %s4, 16
      %v869 = vld [vmem:[%s868] sm:$0xf]
      %v871 = vsel %vm529, %v865, 0
      %v874 = vsel %vm529, %v866, 0
      %v877 = vsel %vm529, %v867, 0
      %v880 = vsel %vm566, %v869, 0
      %882 = vmatprep.subr.bf16.mxu0 0
      %883 = vmatpush1.bf16.msra.mxu0 %v880
      %884 = vmatprep.subr.bf16.mxu0 0
      %885 = vmatpush1.bf16.msra.mxu0 0
      %886 = vmatprep.subr.bf16.mxu0 0
      %887 = vmatpush1.bf16.msra.mxu0 0
      %888 = vmatprep.subr.bf16.mxu0 0
      %889 = vmatpush1.bf16.msra.mxu0 0
      %890 = vmatprep.subr.bf16.mxu0 0
      %891 = vmatpush1.bf16.msra.mxu0 0
      %892 = vmatprep.subr.bf16.mxu0 0
      %893 = vmatpush1.bf16.msra.mxu0 0
      %894 = vmatprep.subr.bf16.mxu0 0
      %895 = vmatpush1.bf16.msra.mxu0 0
      %896 = vmatprep.subr.bf16.mxu0 0
      %897 = vmatpush1.bf16.msra.mxu0 0
      %898 = vmatprep.subr.bf16.mxu0 0
      %899 = vmatpush1.bf16.msra.mxu0 0
      %900 = vmatprep.subr.bf16.mxu0 0
      %901 = vmatpush1.bf16.msra.mxu0 0
      %902 = vmatprep.subr.bf16.mxu0 0
      %903 = vmatpush1.bf16.msra.mxu0 0
      %904 = vmatprep.subr.bf16.mxu0 0
      %905 = vmatpush1.bf16.msra.mxu0 0
      %906 = vmatprep.subr.bf16.mxu0 0
      %907 = vmatpush1.bf16.msra.mxu0 0
      %908 = vmatprep.subr.bf16.mxu0 0
      %909 = vmatpush1.bf16.msra.mxu0 0
      %910 = vmatprep.subr.bf16.mxu0 0
      %911 = vmatpush1.bf16.msra.mxu0 0
      %912 = vmatprep.subr.bf16.mxu0 0
      %913 = vmatpush1.bf16.msra.mxu0 0
      %914 = vmatprep.mubr.bf16.mxu0 0
      %915 = vmatmul.mubr.bf16.gmra.mrb[0].mxu0 %v871
      %v916 = vpop.f32.mrb[0].mxu0
      %v917 = vadd.f32 0.0, %v916
      %v918 = vpop.f32.mrb[0].mxu0
      %v919 = vpop.f32.mrb[0].mxu0
      %v920 = vadd.f32 0.0, %v919
      %v921 = vpop.f32.mrb[0].mxu0
      %922 = vmatprep.mubr.bf16.mxu0 0
      %923 = vmatmul.mubr.bf16.gmra.mrb[0].mxu0 %v874
      %v924 = vpop.f32.mrb[0].mxu0
      %v925 = vadd.f32 0.0, %v924
      %v926 = vpop.f32.mrb[0].mxu0
      %v927 = vpop.f32.mrb[0].mxu0
      %v928 = vadd.f32 0.0, %v927
      %v929 = vpop.f32.mrb[0].mxu0
      %930 = vmatprep.mubr.bf16.mxu0 0
      %931 = vmatmul.mubr.bf16.gmra.mrb[0].mxu0 %v877
      %v932 = vpop.f32.mrb[0].mxu0
      %v933 = vadd.f32 0.0, %v932
      %v934 = vpop.f32.mrb[0].mxu0
      %v935 = vpop.f32.mrb[0].mxu0
      %v936 = vpop.f32.mrb[0].mxu0
      %937 = vdwg.mxu0
      %v938 = vadd.f32 %v855, %v917
      %v939 = vadd.f32 %v856, %v920
      %v940 = vadd.f32 %v857, %v925
      %v941 = vadd.f32 %v858, %v928
      %v942 = vadd.f32 %v859, %v933
      %v943 = vld [vmem:[#allocation2 + $0x8] sm:$0xff]
      %v944 = vld [vmem:[#allocation2 + $0x10] sm:$0xff]
      %v945 = vld [vmem:[#allocation2 + $0x18] sm:$0xff]
      %v946 = vld [vmem:[#allocation2 + $0x20] sm:$0xff]
      %v947 = vld [vmem:[#allocation2 + $0x28] sm:$0xf]
      %v948 = vpack.c.bf16 %v944, %v943
      %v949 = vpack.c.bf16 %v946, %v945
      %v950 = vpack.c.bf16 %v947, %v947
      %s951 = scalar_lea.vmem %s4, 20
      %v952 = vld [vmem:[%s951] sm:$0xf]
      %v954 = vsel %vm529, %v948, 0
      %v957 = vsel %vm529, %v949, 0
      %v960 = vsel %vm529, %v950, 0
      %v963 = vsel %vm566, %v952, 0
      %965 = vmatprep.subr.bf16.mxu0 0
      %966 = vmatpush1.bf16.msra.mxu0 %v963
      %967 = vmatprep.subr.bf16.mxu0 0
      %968 = vmatpush1.bf16.msra.mxu0 0
      %969 = vmatprep.subr.bf16.mxu0 0
      %970 = vmatpush1.bf16.msra.mxu0 0
      %971 = vmatprep.subr.bf16.mxu0 0
      %972 = vmatpush1.bf16.msra.mxu0 0
      %973 = vmatprep.subr.bf16.mxu0 0
      %974 = vmatpush1.bf16.msra.mxu0 0
      %975 = vmatprep.subr.bf16.mxu0 0
      %976 = vmatpush1.bf16.msra.mxu0 0
      %977 = vmatprep.subr.bf16.mxu0 0
      %978 = vmatpush1.bf16.msra.mxu0 0
      %979 = vmatprep.subr.bf16.mxu0 0
      %980 = vmatpush1.bf16.msra.mxu0 0
      %981 = vmatprep.subr.bf16.mxu0 0
      %982 = vmatpush1.bf16.msra.mxu0 0
      %983 = vmatprep.subr.bf16.mxu0 0
      %984 = vmatpush1.bf16.msra.mxu0 0
      %985 = vmatprep.subr.bf16.mxu0 0
      %986 = vmatpush1.bf16.msra.mxu0 0
      %987 = vmatprep.subr.bf16.mxu0 0
      %988 = vmatpush1.bf16.msra.mxu0 0
      %989 = vmatprep.subr.bf16.mxu0 0
      %990 = vmatpush1.bf16.msra.mxu0 0
      %991 = vmatprep.subr.bf16.mxu0 0
      %992 = vmatpush1.bf16.msra.mxu0 0
      %993 = vmatprep.subr.bf16.mxu0 0
      %994 = vmatpush1.bf16.msra.mxu0 0
      %995 = vmatprep.subr.bf16.mxu0 0
      %996 = vmatpush1.bf16.msra.mxu0 0
      %997 = vmatprep.mubr.bf16.mxu0 0
      %998 = vmatmul.mubr.bf16.gmra.mrb[0].mxu0 %v954
      %v999 = vpop.f32.mrb[0].mxu0
      %v1000 = vadd.f32 0.0, %v999
      %v1001 = vpop.f32.mrb[0].mxu0
      %v1002 = vpop.f32.mrb[0].mxu0
      %v1003 = vadd.f32 0.0, %v1002
      %v1004 = vpop.f32.mrb[0].mxu0
      %1005 = vmatprep.mubr.bf16.mxu0 0
      %1006 = vmatmul.mubr.bf16.gmra.mrb[0].mxu0 %v957
      %v1007 = vpop.f32.mrb[0].mxu0
      %v1008 = vadd.f32 0.0, %v1007
      %v1009 = vpop.f32.mrb[0].mxu0
      %v1010 = vpop.f32.mrb[0].mxu0
      %v1011 = vadd.f32 0.0, %v1010
      %v1012 = vpop.f32.mrb[0].mxu0
      %1013 = vmatprep.mubr.bf16.mxu0 0
      %1014 = vmatmul.mubr.bf16.gmra.mrb[0].mxu0 %v960
      %v1015 = vpop.f32.mrb[0].mxu0
      %v1016 = vadd.f32 0.0, %v1015
      %v1017 = vpop.f32.mrb[0].mxu0
      %v1018 = vpop.f32.mrb[0].mxu0
      %v1019 = vpop.f32.mrb[0].mxu0
      %1020 = vdwg.mxu0
      %v1021 = vadd.f32 %v938, %v1000
      %v1022 = vadd.f32 %v939, %v1003
      %v1023 = vadd.f32 %v940, %v1008
      %v1024 = vadd.f32 %v941, %v1011
      %v1025 = vadd.f32 %v942, %v1016
      %v1026 = vld [vmem:[#allocation2 + $0xc] sm:$0xff]
      %v1027 = vld [vmem:[#allocation2 + $0x14] sm:$0xff]
      %v1028 = vld [vmem:[#allocation2 + $0x1c] sm:$0xff]
      %v1029 = vld [vmem:[#allocation2 + $0x24] sm:$0xff]
      %v1030 = vld [vmem:[#allocation2 + $0x2c] sm:$0xf]
      %v1031 = vpack.c.bf16 %v1027, %v1026
      %v1032 = vpack.c.bf16 %v1029, %v1028
      %v1033 = vpack.c.bf16 %v1030, %v1030
      %s1034 = scalar_lea.vmem %s4, 24
      %v1035 = vld [vmem:[%s1034] sm:$0xf]
      %v1037 = vsel %vm529, %v1031, 0
      %v1040 = vsel %vm529, %v1032, 0
      %v1043 = vsel %vm529, %v1033, 0
      %v1046 = vsel %vm566, %v1035, 0
      %1048 = vmatprep.subr.bf16.mxu0 0
      %1049 = vmatpush1.bf16.msra.mxu0 %v1046
      %1050 = vmatprep.subr.bf16.mxu0 0
      %1051 = vmatpush1.bf16.msra.mxu0 0
      %1052 = vmatprep.subr.bf16.mxu0 0
      %1053 = vmatpush1.bf16.msra.mxu0 0
      %1054 = vmatprep.subr.bf16.mxu0 0
      %1055 = vmatpush1.bf16.msra.mxu0 0
      %1056 = vmatprep.subr.bf16.mxu0 0
      %1057 = vmatpush1.bf16.msra.mxu0 0
      %1058 = vmatprep.subr.bf16.mxu0 0
      %1059 = vmatpush1.bf16.msra.mxu0 0
      %1060 = vmatprep.subr.bf16.mxu0 0
      %1061 = vmatpush1.bf16.msra.mxu0 0
      %1062 = vmatprep.subr.bf16.mxu0 0
      %1063 = vmatpush1.bf16.msra.mxu0 0
      %1064 = vmatprep.subr.bf16.mxu0 0
      %1065 = vmatpush1.bf16.msra.mxu0 0
      %1066 = vmatprep.subr.bf16.mxu0 0
      %1067 = vmatpush1.bf16.msra.mxu0 0
      %1068 = vmatprep.subr.bf16.mxu0 0
      %1069 = vmatpush1.bf16.msra.mxu0 0
      %1070 = vmatprep.subr.bf16.mxu0 0
      %1071 = vmatpush1.bf16.msra.mxu0 0
      %1072 = vmatprep.subr.bf16.mxu0 0
      %1073 = vmatpush1.bf16.msra.mxu0 0
      %1074 = vmatprep.subr.bf16.mxu0 0
      %1075 = vmatpush1.bf16.msra.mxu0 0
      %1076 = vmatprep.subr.bf16.mxu0 0
      %1077 = vmatpush1.bf16.msra.mxu0 0
      %1078 = vmatprep.subr.bf16.mxu0 0
      %1079 = vmatpush1.bf16.msra.mxu0 0
      %1080 = vmatprep.mubr.bf16.mxu0 0
      %1081 = vmatmul.mubr.bf16.gmra.mrb[0].mxu0 %v1037
      %v1082 = vpop.f32.mrb[0].mxu0
      %v1083 = vadd.f32 0.0, %v1082
      %v1084 = vpop.f32.mrb[0].mxu0
      %v1085 = vpop.f32.mrb[0].mxu0
      %v1086 = vadd.f32 0.0, %v1085
      %v1087 = vpop.f32.mrb[0].mxu0
      %1088 = vmatprep.mubr.bf16.mxu0 0
      %1089 = vmatmul.mubr.bf16.gmra.mrb[0].mxu0 %v1040
      %v1090 = vpop.f32.mrb[0].mxu0
      %v1091 = vadd.f32 0.0, %v1090
      %v1092 = vpop.f32.mrb[0].mxu0
      %v1093 = vpop.f32.mrb[0].mxu0
      %v1094 = vadd.f32 0.0, %v1093
      %v1095 = vpop.f32.mrb[0].mxu0
      %1096 = vmatprep.mubr.bf16.mxu0 0
      %1097 = vmatmul.mubr.bf16.gmra.mrb[0].mxu0 %v1043
      %v1098 = vpop.f32.mrb[0].mxu0
      %v1099 = vadd.f32 0.0, %v1098
      %v1100 = vpop.f32.mrb[0].mxu0
      %v1101 = vpop.f32.mrb[0].mxu0
      %v1102 = vpop.f32.mrb[0].mxu0
      %1103 = vdwg.mxu0
      %v1104 = vadd.f32 %v1021, %v1083
      %v1105 = vadd.f32 %v1022, %v1086
      %v1106 = vadd.f32 %v1023, %v1091
      %v1107 = vadd.f32 %v1024, %v1094
      %v1108 = vadd.f32 %v1025, %v1099
      %v1109 = vld [vmem:[#allocation2 + $0xd] sm:$0xff]
      %v1110 = vld [vmem:[#allocation2 + $0x15] sm:$0xff]
      %v1111 = vld [vmem:[#allocation2 + $0x1d] sm:$0xff]
      %v1112 = vld [vmem:[#allocation2 + $0x25] sm:$0xff]
      %v1113 = vld [vmem:[#allocation2 + $0x2d] sm:$0xf]
      %v1114 = vpack.c.bf16 %v1110, %v1109
      %v1115 = vpack.c.bf16 %v1112, %v1111
      %v1116 = vpack.c.bf16 %v1113, %v1113
      %s1117 = scalar_lea.vmem %s4, 28
      %v1118 = vld [vmem:[%s1117] sm:$0xf]
      %v1120 = vsel %vm529, %v1114, 0
      %v1123 = vsel %vm529, %v1115, 0
      %v1126 = vsel %vm529, %v1116, 0
      %v1129 = vsel %vm566, %v1118, 0
      %1131 = vmatprep.subr.bf16.mxu0 0
      %1132 = vmatpush1.bf16.msra.mxu0 %v1129
      %1133 = vmatprep.subr.bf16.mxu0 0
      %1134 = vmatpush1.bf16.msra.mxu0 0
      %1135 = vmatprep.subr.bf16.mxu0 0
      %1136 = vmatpush1.bf16.msra.mxu0 0
      %1137 = vmatprep.subr.bf16.mxu0 0
      %1138 = vmatpush1.bf16.msra.mxu0 0
      %1139 = vmatprep.subr.bf16.mxu0 0
      %1140 = vmatpush1.bf16.msra.mxu0 0
      %1141 = vmatprep.subr.bf16.mxu0 0
      %1142 = vmatpush1.bf16.msra.mxu0 0
      %1143 = vmatprep.subr.bf16.mxu0 0
      %1144 = vmatpush1.bf16.msra.mxu0 0
      %1145 = vmatprep.subr.bf16.mxu0 0
      %1146 = vmatpush1.bf16.msra.mxu0 0
      %1147 = vmatprep.subr.bf16.mxu0 0
      %1148 = vmatpush1.bf16.msra.mxu0 0
      %1149 = vmatprep.subr.bf16.mxu0 0
      %1150 = vmatpush1.bf16.msra.mxu0 0
      %1151 = vmatprep.subr.bf16.mxu0 0
      %1152 = vmatpush1.bf16.msra.mxu0 0
      %1153 = vmatprep.subr.bf16.mxu0 0
      %1154 = vmatpush1.bf16.msra.mxu0 0
      %1155 = vmatprep.subr.bf16.mxu0 0
      %1156 = vmatpush1.bf16.msra.mxu0 0
      %1157 = vmatprep.subr.bf16.mxu0 0
      %1158 = vmatpush1.bf16.msra.mxu0 0
      %1159 = vmatprep.subr.bf16.mxu0 0
      %1160 = vmatpush1.bf16.msra.mxu0 0
      %1161 = vmatprep.subr.bf16.mxu0 0
      %1162 = vmatpush1.bf16.msra.mxu0 0
      %1163 = vmatprep.mubr.bf16.mxu0 0
      %1164 = vmatmul.mubr.bf16.gmra.mrb[0].mxu0 %v1120
      %v1165 = vpop.f32.mrb[0].mxu0
      %v1166 = vadd.f32 0.0, %v1165
      %v1167 = vpop.f32.mrb[0].mxu0
      %v1168 = vpop.f32.mrb[0].mxu0
      %v1169 = vadd.f32 0.0, %v1168
      %v1170 = vpop.f32.mrb[0].mxu0
      %1171 = vmatprep.mubr.bf16.mxu0 0
      %1172 = vmatmul.mubr.bf16.gmra.mrb[0].mxu0 %v1123
      %v1173 = vpop.f32.mrb[0].mxu0
      %v1174 = vadd.f32 0.0, %v1173
      %v1175 = vpop.f32.mrb[0].mxu0
      %v1176 = vpop.f32.mrb[0].mxu0
      %v1177 = vadd.f32 0.0, %v1176
      %v1178 = vpop.f32.mrb[0].mxu0
      %1179 = vmatprep.mubr.bf16.mxu0 0
      %1180 = vmatmul.mubr.bf16.gmra.mrb[0].mxu0 %v1126
      %v1181 = vpop.f32.mrb[0].mxu0
      %v1182 = vadd.f32 0.0, %v1181
      %v1183 = vpop.f32.mrb[0].mxu0
      %v1184 = vpop.f32.mrb[0].mxu0
      %v1185 = vpop.f32.mrb[0].mxu0
      %1186 = vdwg.mxu0
      %v1187 = vadd.f32 %v1104, %v1166
      %v1188 = vadd.f32 %v1105, %v1169
      %v1189 = vadd.f32 %v1106, %v1174
      %v1190 = vadd.f32 %v1107, %v1177
      %v1191 = vadd.f32 %v1108, %v1182
      %v1192 = vld [vmem:[#allocation2 + $0xe] sm:$0xff]
      %v1193 = vld [vmem:[#allocation2 + $0x16] sm:$0xff]
      %v1194 = vld [vmem:[#allocation2 + $0x1e] sm:$0xff]
      %v1195 = vld [vmem:[#allocation2 + $0x26] sm:$0xff]
      %v1196 = vld [vmem:[#allocation2 + $0x2e] sm:$0xf]
      %v1197 = vpack.c.bf16 %v1193, %v1192
      %v1198 = vpack.c.bf16 %v1195, %v1194
      %v1199 = vpack.c.bf16 %v1196, %v1196
      %s1200 = scalar_lea.vmem %s4, 32
      %v1201 = vld [vmem:[%s1200] sm:$0xf]
      %v1203 = vsel %vm529, %v1197, 0
      %v1206 = vsel %vm529, %v1198, 0
      %v1209 = vsel %vm529, %v1199, 0
      %v1212 = vsel %vm566, %v1201, 0
      %1214 = vmatprep.subr.bf16.mxu0 0
      %1215 = vmatpush1.bf16.msra.mxu0 %v1212
      %1216 = vmatprep.subr.bf16.mxu0 0
      %1217 = vmatpush1.bf16.msra.mxu0 0
      %1218 = vmatprep.subr.bf16.mxu0 0
      %1219 = vmatpush1.bf16.msra.mxu0 0
      %1220 = vmatprep.subr.bf16.mxu0 0
      %1221 = vmatpush1.bf16.msra.mxu0 0
      %1222 = vmatprep.subr.bf16.mxu0 0
      %1223 = vmatpush1.bf16.msra.mxu0 0
      %1224 = vmatprep.subr.bf16.mxu0 0
      %1225 = vmatpush1.bf16.msra.mxu0 0
      %1226 = vmatprep.subr.bf16.mxu0 0
      %1227 = vmatpush1.bf16.msra.mxu0 0
      %1228 = vmatprep.subr.bf16.mxu0 0
      %1229 = vmatpush1.bf16.msra.mxu0 0
      %1230 = vmatprep.subr.bf16.mxu0 0
      %1231 = vmatpush1.bf16.msra.mxu0 0
      %1232 = vmatprep.subr.bf16.mxu0 0
      %1233 = vmatpush1.bf16.msra.mxu0 0
      %1234 = vmatprep.subr.bf16.mxu0 0
      %1235 = vmatpush1.bf16.msra.mxu0 0
      %1236 = vmatprep.subr.bf16.mxu0 0
      %1237 = vmatpush1.bf16.msra.mxu0 0
      %1238 = vmatprep.subr.bf16.mxu0 0
      %1239 = vmatpush1.bf16.msra.mxu0 0
      %1240 = vmatprep.subr.bf16.mxu0 0
      %1241 = vmatpush1.bf16.msra.mxu0 0
      %1242 = vmatprep.subr.bf16.mxu0 0
      %1243 = vmatpush1.bf16.msra.mxu0 0
      %1244 = vmatprep.subr.bf16.mxu0 0
      %1245 = vmatpush1.bf16.msra.mxu0 0
      %1246 = vmatprep.mubr.bf16.mxu0 0
      %1247 = vmatmul.mubr.bf16.gmra.mrb[0].mxu0 %v1203
      %v1248 = vpop.f32.mrb[0].mxu0
      %v1249 = vadd.f32 0.0, %v1248
      %v1250 = vpop.f32.mrb[0].mxu0
      %v1251 = vpop.f32.mrb[0].mxu0
      %v1252 = vadd.f32 0.0, %v1251
      %v1253 = vpop.f32.mrb[0].mxu0
      %1254 = vmatprep.mubr.bf16.mxu0 0
      %1255 = vmatmul.mubr.bf16.gmra.mrb[0].mxu0 %v1206
      %v1256 = vpop.f32.mrb[0].mxu0
      %v1257 = vadd.f32 0.0, %v1256
      %v1258 = vpop.f32.mrb[0].mxu0
      %v1259 = vpop.f32.mrb[0].mxu0
      %v1260 = vadd.f32 0.0, %v1259
      %v1261 = vpop.f32.mrb[0].mxu0
      %1262 = vmatprep.mubr.bf16.mxu0 0
      %1263 = vmatmul.mubr.bf16.gmra.mrb[0].mxu0 %v1209
      %v1264 = vpop.f32.mrb[0].mxu0
      %v1265 = vadd.f32 0.0, %v1264
      %v1266 = vpop.f32.mrb[0].mxu0
      %v1267 = vpop.f32.mrb[0].mxu0
      %v1268 = vpop.f32.mrb[0].mxu0
      %1269 = vdwg.mxu0
      %v1270 = vadd.f32 %v1187, %v1249
      %v1271 = vadd.f32 %v1188, %v1252
      %v1272 = vadd.f32 %v1189, %v1257
      %v1273 = vadd.f32 %v1190, %v1260
      %v1274 = vadd.f32 %v1191, %v1265
      %v1275 = vld [vmem:[%s5] sm:$0x1]
      %v1277 = vlaneseq
      %v1278 = vshrl.u32 %v1277, 7
      %v1279 = vsub.s32 0, %v1278
      %v1280 = vrot.slane %v1275, %v1279
      %v1282 = vadd.f32 %v1270, %v1280
      %v1283 = vadd.f32 %v1271, %v1280
      %v1284 = vadd.f32 %v1272, %v1280
      %v1285 = vadd.f32 %v1273, %v1280
      %v1286 = vadd.f32 %v1274, %v1280
      %v1287 = vmax.f32 %v1282, 0.0
      %v1288 = vmax.f32 %v1283, 0.0
      %v1289 = vmax.f32 %v1284, 0.0
      %v1290 = vmax.f32 %v1285, 0.0
      %v1291 = vmax.f32 %v1286, 0.0
      %v1292 = vpack.c.bf16 %v1288, %v1287
      %v1293 = vpack.c.bf16 %v1290, %v1289
      %v1294 = vpack.c.bf16 %v1291, %v1291
      %v1295 = vld [vmem:[%s6] sm:$0xf]
      %v1296 = vld [vmem:[%s7] sm:$0x1]
      %v1298 = vlaneseq
      %v1299 = vshrl.u32 %v1298, 7
      %v1300 = vsub.s32 0, %v1299
      %v1301 = vrot.slane %v1296, %v1300
      %v1304 = vsel %vm529, %v1292, 0
      %v1307 = vsel %vm529, %v1293, 0
      %v1310 = vsel %vm529, %v1294, 0
      %v1313 = vsel %vm566, %v1295, 0
      %1315 = vmatprep.subr.bf16.mxu0 0
      %1316 = vmatpush1.bf16.msra.mxu0 %v1313
      %1317 = vmatprep.subr.bf16.mxu0 0
      %1318 = vmatpush1.bf16.msra.mxu0 0
      %1319 = vmatprep.subr.bf16.mxu0 0
      %1320 = vmatpush1.bf16.msra.mxu0 0
      %1321 = vmatprep.subr.bf16.mxu0 0
      %1322 = vmatpush1.bf16.msra.mxu0 0
      %1323 = vmatprep.subr.bf16.mxu0 0
      %1324 = vmatpush1.bf16.msra.mxu0 0
      %1325 = vmatprep.subr.bf16.mxu0 0
      %1326 = vmatpush1.bf16.msra.mxu0 0
      %1327 = vmatprep.subr.bf16.mxu0 0
      %1328 = vmatpush1.bf16.msra.mxu0 0
      %1329 = vmatprep.subr.bf16.mxu0 0
      %1330 = vmatpush1.bf16.msra.mxu0 0
      %1331 = vmatprep.subr.bf16.mxu0 0
      %1332 = vmatpush1.bf16.msra.mxu0 0
      %1333 = vmatprep.subr.bf16.mxu0 0
      %1334 = vmatpush1.bf16.msra.mxu0 0
      %1335 = vmatprep.subr.bf16.mxu0 0
      %1336 = vmatpush1.bf16.msra.mxu0 0
      %1337 = vmatprep.subr.bf16.mxu0 0
      %1338 = vmatpush1.bf16.msra.mxu0 0
      %1339 = vmatprep.subr.bf16.mxu0 0
      %1340 = vmatpush1.bf16.msra.mxu0 0
      %1341 = vmatprep.subr.bf16.mxu0 0
      %1342 = vmatpush1.bf16.msra.mxu0 0
      %1343 = vmatprep.subr.bf16.mxu0 0
      %1344 = vmatpush1.bf16.msra.mxu0 0
      %1345 = vmatprep.subr.bf16.mxu0 0
      %1346 = vmatpush1.bf16.msra.mxu0 0
      %1347 = vmatprep.mubr.bf16.mxu0 0
      %1348 = vmatmul.mubr.bf16.gmra.mrb[0].mxu0 %v1304
      %v1349 = vpop.f32.mrb[0].mxu0
      %v1350 = vadd.f32 %v1301, %v1349
      %v1351 = vpop.f32.mrb[0].mxu0
      %v1352 = vpop.f32.mrb[0].mxu0
      %v1353 = vadd.f32 %v1301, %v1352
      %v1354 = vpop.f32.mrb[0].mxu0
      %1355 = vmatprep.mubr.bf16.mxu0 0
      %1356 = vmatmul.mubr.bf16.gmra.mrb[0].mxu0 %v1307
      %v1357 = vpop.f32.mrb[0].mxu0
      %v1358 = vadd.f32 %v1301, %v1357
      %v1359 = vpop.f32.mrb[0].mxu0
      %v1360 = vpop.f32.mrb[0].mxu0
      %v1361 = vadd.f32 %v1301, %v1360
      %v1362 = vpop.f32.mrb[0].mxu0
      %1363 = vmatprep.mubr.bf16.mxu0 0
      %1364 = vmatmul.mubr.bf16.gmra.mrb[0].mxu0 %v1310
      %v1365 = vpop.f32.mrb[0].mxu0
      %v1366 = vadd.f32 %v1301, %v1365
      %v1367 = vpop.f32.mrb[0].mxu0
      %v1368 = vpop.f32.mrb[0].mxu0
      %v1369 = vpop.f32.mrb[0].mxu0
      %1370 = vdwg.mxu0
      %v1371 = vld [vmem:[%s347 + $0x7] sm:$0xff]
      %v1372 = vld [vmem:[%s347 + $0xf] sm:$0xff]
      %v1373 = vld [vmem:[%s347 + $0x17] sm:$0xff]
      %v1374 = vld [vmem:[%s347 + $0x1f] sm:$0xff]
      %v1375 = vld [vmem:[%s347 + $0x27] sm:$0xf]
      %v1376 = vadd.f32 %v1350, %v1371
      %v1377 = vadd.f32 %v1353, %v1372
      %v1378 = vadd.f32 %v1358, %v1373
      %v1379 = vadd.f32 %v1361, %v1374
      %v1380 = vadd.f32 %v1366, %v1375
      %v1381 = vmax.f32 %v1376, 0.0
      %v1382 = vmax.f32 %v1377, 0.0
      %v1383 = vmax.f32 %v1378, 0.0
      %v1384 = vmax.f32 %v1379, 0.0
      %v1385 = vmax.f32 %v1380, 0.0
      %v1386 = vld [vmem:[%s352 + $0x7] sm:$0xff]
      %v1387 = vld [vmem:[%s352 + $0xf] sm:$0xff]
      %v1388 = vld [vmem:[%s352 + $0x17] sm:$0xff]
      %v1389 = vld [vmem:[%s352 + $0x1f] sm:$0xff]
      %v1390 = vld [vmem:[%s352 + $0x27] sm:$0xf]
      %vm1391 = vcmp.gt.f32.partialorder %v1386, 0.5
      %vm1392 = vcmp.gt.f32.partialorder %v1387, 0.5
      %vm1393 = vcmp.gt.f32.partialorder %v1388, 0.5
      %vm1394 = vcmp.gt.f32.partialorder %v1389, 0.5
      %vm1395 = vcmp.gt.f32.partialorder %v1390, 0.5
      %v1396 = vsel %vm1391, 1, 0
      %v1397 = vsel %vm1392, 1, 0
      %v1398 = vsel %vm1393, 1, 0
      %v1399 = vsel %vm1394, 1, 0
      %v1400 = vsel %vm1395, 1, 0
      %1401 = vset.pattern.permute.xlu0 0
      %1402 = vperm.xlu0 %1401, %v1396
      %v1403 = vpop.permute.xlu0 %1402
      %1404 = vset.pattern.permute.xlu0 0
      %1405 = vperm.xlu0 %1404, %v1397
      %v1406 = vpop.permute.xlu0 %1405
      %1407 = vset.pattern.permute.xlu0 0
      %1408 = vperm.xlu0 %1407, %v1398
      %v1409 = vpop.permute.xlu0 %1408
      %1410 = vset.pattern.permute.xlu0 0
      %1411 = vperm.xlu0 %1410, %v1399
      %v1412 = vpop.permute.xlu0 %1411
      %1413 = vset.pattern.permute.xlu0 0
      %1414 = vperm.xlu0 %1413, %v1400
      %v1415 = vpop.permute.xlu0 %1414
      %vm1416 = vcmp.eq.s32.totalorder %v1403, 1
      %vm1417 = vcmp.eq.s32.totalorder %v1406, 1
      %vm1418 = vcmp.eq.s32.totalorder %v1409, 1
      %vm1419 = vcmp.eq.s32.totalorder %v1412, 1
      %vm1420 = vcmp.eq.s32.totalorder %v1415, 1
      %v1421 = vsel %vm1416, %v1381, 0.0
      %v1422 = vsel %vm1417, %v1382, 0.0
      %v1423 = vsel %vm1418, %v1383, 0.0
      %v1424 = vsel %vm1419, %v1384, 0.0
      %v1425 = vsel %vm1420, %v1385, 0.0
      %1426 = vst.msk [vmem:[%s361] sm:$0xff] %vm389, %v1421
      %1427 = vst.msk [vmem:[%s361 + $0x8] sm:$0xff] %vm389, %v1422
      %1428 = vst.msk [vmem:[%s361 + $0x10] sm:$0xff] %vm389, %v1423
      %1429 = vst.msk [vmem:[%s361 + $0x18] sm:$0xff] %vm389, %v1424
      %vm1430 = vcmask 125952
      %1431 = vst.msk [vmem:[%s361 + $0x20] sm:$0xf] %vm1430, %v1425
      %p1432 = scmp.lt.s32.totalorder %s23, 1
      %s1433 = scalar_select %p1432, %s23, 1
      %p1434 = scmp.lt.s32.totalorder %s24, 0
      %s1435 = scalar_select %p1434, %s24, 0
      %s1436 = smul.addr %s1435, 5
      %s1437 = smul.addr %s1433, 5
      %s1438 = sadd.s32 %s1436, %s1437
      %s1439 = smul.addr %s1438, 8
      %s1440 = scalar_lea.vmem %s8, %s1439
      // Predicated region
      $region53: #{tpu_custom_call.1} parent=51 // pred_check
        %p1441 = pneg %p231
      $region54: #{tpu_custom_call.1} parent=51 // pred_check_branch
        %1443 = sbr.rel (%p1441) target = $region56
      $region55: #{tpu_custom_call.1} parent=51 // pred_region
        _
      $region56: #{tpu_custom_call.1} parent=51 // pred_fallthru
        _
    $region52: #{tpu_custom_call.1} parent=5 // pred_fallthru
      _
    %p1444 = scmp.le.s32.totalorder 2, %s14
    // Predicated region
    $region57: #{tpu_custom_call.1} parent=5 // pred_check
      %p1445 = pneg %p1444
    $region58: #{tpu_custom_call.1} parent=5 // pred_check_branch
      %1447 = sbr.rel (%p1445) target = $region60
    $region59: #{tpu_custom_call.1} parent=5 // pred_region
      %s1448 = ssub.s32 %s14, 2
      // Predicated region
      $region61: #{tpu_custom_call.1} parent=59 // pred_check
        %p1449 = pneg %p237
      $region62: #{tpu_custom_call.1} parent=59 // pred_check_branch
        %1451 = sbr.rel (%p1449) target = $region64
      $region63: #{tpu_custom_call.1} parent=59 // pred_region
        %p1452 = scmp.lt.s32.totalorder %s25, 1
        %s1453 = scalar_select %p1452, %s25, 1
        %p1454 = scmp.lt.s32.totalorder %s26, 0
        %s1455 = scalar_select %p1454, %s26, 0
        %s1456 = smul.addr %s1455, 5
        %s1457 = smul.addr %s1453, 5
        %s1458 = sadd.s32 %s1456, %s1457
        %s1459 = smul.addr %s1458, 8
        %s1460 = scalar_lea.vmem %s8, %s1459
      $region64: #{tpu_custom_call.1} parent=59 // pred_fallthru
        _
    $region60: #{tpu_custom_call.1} parent=5 // pred_fallthru
      _
  $region6: #{tpu_custom_call.1} parent=0 // loop_footer
    %s18 = sadd.s32 1, %s14
  $region7: #{tpu_custom_call.1} parent=0 // loop_footer_branch
    %13 = sbr.rel target = $region3
  $region8: #{tpu_custom_call.1} parent=0 // loop_exit
    _

</llo_original>
